<compile_context>
chip_gen: v7x
topology: tpu7x:2x2x1
jax: 0.10.0
libtpu: 0.0.40
codegen_flags: <defaults>
</compile_context>

<pallas_src>
import functools
import math

import jax
import jax.numpy as jnp
from jax.experimental import pallas as pl
from jax.experimental.pallas import tpu as pltpu


# ---------------------------------------------------------------------------
# VMEM sizing helpers
# ---------------------------------------------------------------------------

_VMEM_BUDGET = 36 * 1024 * 1024        # per-step working-set target for tile sizing
_VMEM_LIMIT_CAP = 44 * 1024 * 1024     # scoped-VMEM request ceiling (< v7x 64 MiB physical)
_SINGLE_BUFFER_MIN_BYTES = 512 * 1024  # only force single-buffering on big residents


def _resident_spec(block_shape, index_map):
    """BlockSpec for constant-index (resident) blocks.

    Large residents request a single pipeline buffer (double-buffering a
    constant block is pure VMEM waste); small residents keep the default so
    the most battle-tested lowering path is used.  Falls back cleanly if this
    JAX version does not expose BlockSpec.pipeline_mode / pl.Buffered.
    """
    nbytes = 4 * math.prod(block_shape)
    if nbytes >= _SINGLE_BUFFER_MIN_BYTES:
        try:
            return pl.BlockSpec(block_shape, index_map,
                                pipeline_mode=pl.Buffered(1))
        except Exception:  # pragma: no cover - older jax without pipeline_mode
            pass
    return pl.BlockSpec(block_shape, index_map)


def _pick_rows(n_rows, per_row_bytes, fixed_bytes, cap=1024):
    """Largest row tile (multiple of 8, <= cap) whose per-step footprint
    (fixed residents + per-row double-buffered I/O + temporaries) fits the
    VMEM budget."""
    avail = _VMEM_BUDGET - fixed_bytes
    t = avail // max(per_row_bytes, 1)
    t = max(8, min(int(t), cap))
    if t >= n_rows:
        return int(n_rows)
    return max(8, (t // 8) * 8)


def _vmem_limit(est_bytes):
    """Scoped-VMEM request: what the tiling actually needs (x2 headroom),
    never below 4 MiB, never above the v7x-safe cap."""
    return int(min(_VMEM_LIMIT_CAP, max(4 * 1024 * 1024, 2 * est_bytes)))


# ---------------------------------------------------------------------------
# Pallas kernels
# ---------------------------------------------------------------------------

def _in_proj_kernel(x_ref, w_ref, b_ref, q_ref, k_ref, v_ref, *, encode_dim):
    """Fused Q/K/V input projections for one row tile.

    One (tm, E) x (E, 2*Ce+E) MXU pass against the concatenated, pre-transposed
    weight (single weight-load phase), then static column slices feed the
    three outputs.  The 1/sqrt(d_qk) scaling is pre-folded into the Q columns.
    """
    y = jnp.dot(x_ref[...], w_ref[...], preferred_element_type=jnp.float32)
    y = y + b_ref[...]
    ce = encode_dim
    q_ref[...] = y[:, :ce]
    k_ref[...] = y[:, ce:2 * ce]
    v_ref[...] = y[:, 2 * ce:]


def _attn_kernel(q_ref, k_ref, v_ref, wo_ref, bo_ref, o_ref, *maybe_w_ref,
                 num_heads, qk_head_dim, v_head_dim):
    """Attention core + fused output projection for one (batch, query-tile).

    Per-head work uses static lane slices of the (rows, channels) slabs, so
    no in-kernel reshapes / HBM head transposes are needed.  The per-head
    contexts are concatenated head-major and projected with ONE full-K
    (tq, E) x (E, E) MXU matmul.  If a weights ref is present, the
    head-averaged attention weights are emitted as well.
    """
    w_ref = maybe_w_ref[0] if maybe_w_ref else None

    q = q_ref[0]        # (tq, Ce)  -- already scaled by 1/sqrt(d_qk)
    k = k_ref[0]        # (S,  Ce)
    v = v_ref[0]        # (S,  E)

    ctxs = []
    w_acc = None
    for h in range(num_heads):                      # static unroll over heads
        qh = q[:, h * qk_head_dim:(h + 1) * qk_head_dim]      # (tq, dqk)
        kh = k[:, h * qk_head_dim:(h + 1) * qk_head_dim]      # (S,  dqk)
        vh = v[:, h * v_head_dim:(h + 1) * v_head_dim]        # (S,  dv)

        s = jnp.einsum('qd,kd->qk', qh, kh,
                       preferred_element_type=jnp.float32)    # (tq, S)
        s = s - jnp.max(s, axis=-1, keepdims=True)
        e = jnp.exp(s)
        # Exact divide (not approx reciprocal) -> parity with torch softmax.
        p = e / jnp.sum(e, axis=-1, keepdims=True)
        # TODO(synk): attention-weight dropout omitted (module default p=0.0).
        ctxs.append(jnp.dot(p, vh, preferred_element_type=jnp.float32))
        if w_ref is not None:
            w_acc = p if w_acc is None else w_acc + p

    ctx = jnp.concatenate(ctxs, axis=-1)            # (tq, E), head-major
    out = jnp.dot(ctx, wo_ref[...],
                  preferred_element_type=jnp.float32) + bo_ref[...]
    o_ref[0] = out
    if w_ref is not None:
        w_ref[0] = w_acc * (1.0 / num_heads)


# ---------------------------------------------------------------------------
# One-time weight preparation (hoisted out of the per-call hot path)
# ---------------------------------------------------------------------------

def prepare_params(params, num_heads):
    """Transpose weights to (in, out) so the MXU is fed directly, fold the
    1/sqrt(d_qk) query scaling into the Q projection, and concatenate the
    Q|K|V projection weights into a single matrix.  Call ONCE per parameter
    set; the jitted forward then never re-does this work."""
    in_w = params["in_proj_weight"]                  # (2*Ce, E)
    in_b = params["in_proj_bias"]                    # (2*Ce,)
    encode_dim = in_w.shape[0] // 2
    qk_head_dim = encode_dim // num_heads
    scaling = float(qk_head_dim) ** (-0.5)

    wq = in_w[:encode_dim] * scaling
    bq = in_b[:encode_dim] * scaling
    wk = in_w[encode_dim:]
    bk = in_b[encode_dim:]
    wv = params["v_proj_weight"]
    bv = params["v_proj_bias"]

    w_in = jnp.concatenate([wq, wk, wv], axis=0).T   # (E, 2*Ce + E)
    b_in = jnp.concatenate([bq, bk, bv], axis=0)[None, :]
    w_out = params["out_proj_weight"].T              # (E, E), rows head-major
    b_out = params["out_proj_bias"][None, :]         # (1, E)
    return {"w_in": w_in, "b_in": b_in, "w_out": w_out, "b_out": b_out}


# ---------------------------------------------------------------------------
# Forward pass
# ---------------------------------------------------------------------------

@functools.partial(jax.jit, static_argnames=("num_heads", "need_weights"))
def multihead_attention_fwd(query, prepared, num_heads, need_weights=True):
    """query: (tgt_len, bsz, embed_dim) float32; prepared: prepare_params(...).

    Returns (attn_output (tgt_len, bsz, embed_dim),
             attn_weights (bsz, tgt_len, src_len) or None),
    matching torch MultiheadAttention(quick_mode=False).forward(query).
    """
    tgt_len, bsz, embed_dim = query.shape
    w_in, b_in = prepared["w_in"], prepared["b_in"]
    w_out, b_out = prepared["w_out"], prepared["b_out"]
    encode_dim = (w_in.shape[1] - embed_dim) // 2
    qk_head_dim = encode_dim // num_heads
    v_head_dim = embed_dim // num_heads
    src_len = tgt_len                      # self-attention on `query`
    n = tgt_len * bsz
    cols_out = 2 * encode_dim + embed_dim

    # Batch-major once up front: every downstream Pallas block is then a
    # contiguous, lane-dense (rows, full-channel) slab.  This single relayout
    # (plus one on the final output) replaces the previous four head
    # transposes of Q/K/V and the attention output.
    x2d = jnp.transpose(query, (1, 0, 2)).reshape(n, embed_dim)

    # ---- 1) fused input projection: row-tiled, weights resident ------------
    # Per-step bytes: x + q/k/v blocks double-buffered + matmul temp; weights
    # counted double-buffered (conservative even when Buffered(1) is applied).
    per_row = 4 * (2 * embed_dim + 3 * cols_out)
    fixed = 4 * (embed_dim + 1) * cols_out * 2
    tm = _pick_rows(n, per_row, fixed)
    est_proj = fixed + per_row * tm

    q2d, k2d, v2d = pl.pallas_call(
        functools.partial(_in_proj_kernel, encode_dim=encode_dim),
        out_shape=(
            jax.ShapeDtypeStruct((n, encode_dim), jnp.float32),
            jax.ShapeDtypeStruct((n, encode_dim), jnp.float32),
            jax.ShapeDtypeStruct((n, embed_dim), jnp.float32),
        ),
        grid=(pl.cdiv(n, tm),),
        in_specs=[
            pl.BlockSpec((tm, embed_dim), lambda i: (i, 0)),
            _resident_spec((embed_dim, cols_out), lambda i: (0, 0)),
            _resident_spec((1, cols_out), lambda i: (0, 0)),
        ],
        out_specs=(
            pl.BlockSpec((tm, encode_dim), lambda i: (i, 0)),
            pl.BlockSpec((tm, encode_dim), lambda i: (i, 0)),
            pl.BlockSpec((tm, embed_dim), lambda i: (i, 0)),
        ),
        compiler_params=pltpu.CompilerParams(
            dimension_semantics=("parallel",),
            vmem_limit_bytes=_vmem_limit(est_proj)),
    )(x2d, w_in, b_in)

    # Layout-preserving 3-D views (free when tgt_len % 8 == 0): (bsz, T, C).
    q3 = q2d.reshape(bsz, tgt_len, encode_dim)
    k3 = k2d.reshape(bsz, src_len, encode_dim)
    v3 = v2d.reshape(bsz, src_len, embed_dim)

    # ---- 2) attention core + fused output projection ------------------------
    # Per step: one batch element's K/V resident (double-buffered across b),
    # query rows tiled by tq; wo/bo resident.
    # TODO(synk): flash-style KV tiling for long src_len.
    fixed = 4 * (2 * src_len * (encode_dim + embed_dim)
                 + 2 * (embed_dim * embed_dim + embed_dim))
    per_row = 4 * (2 * encode_dim + 4 * embed_dim + 4 * src_len
                   + (2 * src_len if need_weights else 0))
    tq = _pick_rows(tgt_len, per_row, fixed, cap=512)
    nq = pl.cdiv(tgt_len, tq)
    est_attn = fixed + per_row * tq

    qkv_specs = [
        pl.BlockSpec((1, tq, encode_dim), lambda b, i: (b, i, 0)),
        pl.BlockSpec((1, src_len, encode_dim), lambda b, i: (b, 0, 0)),
        pl.BlockSpec((1, src_len, embed_dim), lambda b, i: (b, 0, 0)),
        _resident_spec((embed_dim, embed_dim), lambda b, i: (0, 0)),
        _resident_spec((1, embed_dim), lambda b, i: (0, 0)),
    ]
    kern = functools.partial(_attn_kernel, num_heads=num_heads,
                             qk_head_dim=qk_head_dim, v_head_dim=v_head_dim)
    cparams = pltpu.CompilerParams(
        dimension_semantics=("parallel", "parallel"),
        vmem_limit_bytes=_vmem_limit(est_attn))

    if need_weights:
        out3, attn_weights = pl.pallas_call(
            kern,
            out_shape=(
                jax.ShapeDtypeStruct((bsz, tgt_len, embed_dim), jnp.float32),
                jax.ShapeDtypeStruct((bsz, tgt_len, src_len), jnp.float32),
            ),
            grid=(bsz, nq),
            in_specs=qkv_specs,
            out_specs=(
                pl.BlockSpec((1, tq, embed_dim), lambda b, i: (b, i, 0)),
                pl.BlockSpec((1, tq, src_len), lambda b, i: (b, i, 0)),
            ),
            compiler_params=cparams,
        )(q3, k3, v3, w_out, b_out)
    else:
        out3 = pl.pallas_call(
            kern,
            out_shape=jax.ShapeDtypeStruct((bsz, tgt_len, embed_dim),
                                           jnp.float32),
            grid=(bsz, nq),
            in_specs=qkv_specs,
            out_specs=pl.BlockSpec((1, tq, embed_dim), lambda b, i: (b, i, 0)),
            compiler_params=cparams,
        )(q3, k3, v3, w_out, b_out)
        attn_weights = None

    attn_output = jnp.transpose(out3, (1, 0, 2))    # (tgt_len, bsz, embed_dim)
    return attn_output, attn_weights


def multihead_attention(query, params, num_heads, need_weights=True):
    """Convenience wrapper (prep + forward).  For repeated calls, hoist
    prepare_params(...) out of the loop and call multihead_attention_fwd."""
    prepared = prepare_params(params, num_heads)
    return multihead_attention_fwd(query, prepared, num_heads=num_heads,
                                   need_weights=need_weights)


# ---------------------------------------------------------------------------
# Deterministic parameter init (mirrors the module's _reset_parameters)
# ---------------------------------------------------------------------------

def init_params(key, embed_dim, encode_dim):
    k1, k2, k3 = jax.random.split(key, 3)

    def xavier_uniform(k, shape):
        fan_out, fan_in = shape
        bound = math.sqrt(6.0 / (fan_in + fan_out))
        return jax.random.uniform(k, shape, jnp.float32, -bound, bound)

    def linear_default(k, shape):   # PyTorch Linear default weight init
        fan_in = shape[1]
        bound = 1.0 / math.sqrt(fan_in)
        return jax.random.uniform(k, shape, jnp.float32, -bound, bound)

    return {
        "in_proj_weight": xavier_uniform(k1, (2 * encode_dim, embed_dim)),
        "in_proj_bias": jnp.zeros((2 * encode_dim,), jnp.float32),
        "v_proj_weight": xavier_uniform(k2, (embed_dim, embed_dim)),
        "v_proj_bias": jnp.zeros((embed_dim,), jnp.float32),
        "out_proj_weight": linear_default(k3, (embed_dim, embed_dim)),
        "out_proj_bias": jnp.zeros((embed_dim,), jnp.float32),
    }


# ---------------------------------------------------------------------------
# Pure-JAX reference for numerical check
# ---------------------------------------------------------------------------

def reference(query, params, num_heads):
    tgt_len, bsz, embed_dim = query.shape
    encode_dim = params["in_proj_weight"].shape[0] // 2
    qk_hd = encode_dim // num_heads
    v_hd = embed_dim // num_heads
    qk = query @ params["in_proj_weight"].T + params["in_proj_bias"]
    q, k = qk[..., :encode_dim], qk[..., encode_dim:]
    v = query @ params["v_proj_weight"].T + params["v_proj_bias"]
    q = q * (float(qk_hd) ** -0.5)
    q = q.reshape(tgt_len, bsz * num_heads, qk_hd).transpose(1, 0, 2)
    k = k.reshape(tgt_len, bsz * num_heads, qk_hd).transpose(1, 0, 2)
    v = v.reshape(tgt_len, bsz * num_heads, v_hd).transpose(1, 0, 2)
    w = jax.nn.softmax(jnp.einsum("bqd,bkd->bqk", q, k), axis=-1)
    o = jnp.einsum("bqk,bkd->bqd", w, v)
    o = o.transpose(1, 0, 2).reshape(tgt_len, bsz, embed_dim)
    o = o @ params["out_proj_weight"].T + params["out_proj_bias"]
    w_avg = w.reshape(bsz, num_heads, tgt_len, tgt_len).sum(axis=1) / num_heads
    return o, w_avg


# ---------------------------------------------------------------------------
if __name__ == "__main__":
    embed_dim, num_heads, encode_dim = 32, 4, 32
    tgt_len, bsz = 8, 2

    key = jax.random.PRNGKey(0)
    kq, kp = jax.random.split(key)
    query = jax.random.normal(kq, (tgt_len, bsz, embed_dim), jnp.float32)
    params = init_params(kp, embed_dim, encode_dim)

    # One-time weight prep hoisted out of the hot path; forward is jitted.
    prepared = prepare_params(params, num_heads)

    out, weights = multihead_attention_fwd(query, prepared,
                                           num_heads=num_heads,
                                           need_weights=True)
    out = jax.block_until_ready(out)
    weights = jax.block_until_ready(weights)

    out_nw, no_w = multihead_attention_fwd(query, prepared,
                                           num_heads=num_heads,
                                           need_weights=False)
    out_nw = jax.block_until_ready(out_nw)

    ref_out, ref_w = reference(query, params, num_heads)
    assert out.shape == (tgt_len, bsz, embed_dim)
    assert weights.shape == (bsz, tgt_len, tgt_len)
    assert no_w is None
    assert jnp.allclose(out, ref_out, atol=1e-4, rtol=1e-4)
    assert jnp.allclose(weights, ref_w, atol=1e-4, rtol=1e-4)
    assert jnp.allclose(out_nw, out, atol=1e-6, rtol=1e-6)

    print("KERNEL_OK")
</pallas_src>

<mosaic_0001>
module attributes {stable_mosaic.version = 11 : i64} {
  func.func @_in_proj_kernel(%arg0: i32, %arg1: memref<16x32xf32, #tpu.memory_space<vmem>>, %arg2: memref<32x96xf32, #tpu.memory_space<vmem>>, %arg3: memref<1x96xf32, #tpu.memory_space<vmem>>, %arg4: memref<16x32xf32, #tpu.memory_space<vmem>>, %arg5: memref<16x32xf32, #tpu.memory_space<vmem>>, %arg6: memref<16x32xf32, #tpu.memory_space<vmem>>) attributes {dimension_semantics = [#tpu.dimension_semantics<parallel>], iteration_bounds = array<i64: 1>, scalar_prefetch = 0 : i64, scratch_operands = 0 : i64, tpu.core_type = #tpu.core_type<tc>, window_params = [{transform_indices = @transform_0, window_bounds = array<i64: 16, 32>}, {pipeline_mode = #tpu.pipeline_mode<synchronous>, transform_indices = @transform_1, window_bounds = array<i64: 32, 96>}, {pipeline_mode = #tpu.pipeline_mode<synchronous>, transform_indices = @transform_2, window_bounds = array<i64: 1, 96>}, {transform_indices = @transform_3, window_bounds = array<i64: 16, 32>}, {transform_indices = @transform_4, window_bounds = array<i64: 16, 32>}, {transform_indices = @transform_5, window_bounds = array<i64: 16, 32>}]} {
    %c0 = arith.constant 0 : index
    %c0_0 = arith.constant 0 : index
    %0 = vector.load %arg1[%c0, %c0_0] : memref<16x32xf32, #tpu.memory_space<vmem>>, vector<16x32xf32>
    %c0_1 = arith.constant 0 : index
    %c0_2 = arith.constant 0 : index
    %1 = vector.load %arg2[%c0_1, %c0_2] : memref<32x96xf32, #tpu.memory_space<vmem>>, vector<32x96xf32>
    %cst = arith.constant dense<0.000000e+00> : vector<16x96xf32>
    %2 = tpu.matmul %0, %1, %cst {dimension_numbers = #tpu.dot_dimension_numbers<[1], [0], [0], [1], [0, 0, 1, 1], [], []>} : vector<16x32xf32>, vector<32x96xf32>, vector<16x96xf32> -> vector<16x96xf32>
    %c0_3 = arith.constant 0 : index
    %c0_4 = arith.constant 0 : index
    %3 = vector.load %arg3[%c0_3, %c0_4] : memref<1x96xf32, #tpu.memory_space<vmem>>, vector<1x96xf32>
    %4 = vector.broadcast %3 : vector<1x96xf32> to vector<16x96xf32>
    %5 = arith.addf %2, %4 : vector<16x96xf32>
    %6 = vector.extract_strided_slice %5 {offsets = [0, 0], sizes = [16, 32], strides = [1, 1]} : vector<16x96xf32> to vector<16x32xf32>
    %c0_5 = arith.constant 0 : index
    %c0_6 = arith.constant 0 : index
    %7 = vector.load %arg4[%c0_5, %c0_6] : memref<16x32xf32, #tpu.memory_space<vmem>>, vector<16x32xf32>
    tpu.vector_store %arg4[%c0_5, %c0_6], %6 {strides = array<i32>} : memref<16x32xf32, #tpu.memory_space<vmem>>, vector<16x32xf32>,
    %8 = vector.extract_strided_slice %5 {offsets = [0, 32], sizes = [16, 32], strides = [1, 1]} : vector<16x96xf32> to vector<16x32xf32>
    %c0_7 = arith.constant 0 : index
    %c0_8 = arith.constant 0 : index
    %9 = vector.load %arg5[%c0_7, %c0_8] : memref<16x32xf32, #tpu.memory_space<vmem>>, vector<16x32xf32>
    tpu.vector_store %arg5[%c0_7, %c0_8], %8 {strides = array<i32>} : memref<16x32xf32, #tpu.memory_space<vmem>>, vector<16x32xf32>,
    %10 = vector.extract_strided_slice %5 {offsets = [0, 64], sizes = [16, 32], strides = [1, 1]} : vector<16x96xf32> to vector<16x32xf32>
    %c0_9 = arith.constant 0 : index
    %c0_10 = arith.constant 0 : index
    %11 = vector.load %arg6[%c0_9, %c0_10] : memref<16x32xf32, #tpu.memory_space<vmem>>, vector<16x32xf32>
    tpu.vector_store %arg6[%c0_9, %c0_10], %10 {strides = array<i32>} : memref<16x32xf32, #tpu.memory_space<vmem>>, vector<16x32xf32>,
    return
  }
  func.func @transform_0(%arg0: i32) -> (i32, i32) {
    %c0_i32 = arith.constant 0 : i32
    %c0_i32_0 = arith.constant 0 : i32
    return %arg0, %c0_i32 : i32, i32
  }
  func.func @transform_1(%arg0: i32) -> (i32, i32) {
    %c0_i32 = arith.constant 0 : i32
    %c0_i32_0 = arith.constant 0 : i32
    %c0_i32_1 = arith.constant 0 : i32
    return %c0_i32, %c0_i32_0 : i32, i32
  }
  func.func @transform_2(%arg0: i32) -> (i32, i32) {
    %c0_i32 = arith.constant 0 : i32
    %c0_i32_0 = arith.constant 0 : i32
    %c0_i32_1 = arith.constant 0 : i32
    return %c0_i32, %c0_i32_0 : i32, i32
  }
  func.func @transform_3(%arg0: i32) -> (i32, i32) {
    %c0_i32 = arith.constant 0 : i32
    %c0_i32_0 = arith.constant 0 : i32
    return %arg0, %c0_i32 : i32, i32
  }
  func.func @transform_4(%arg0: i32) -> (i32, i32) {
    %c0_i32 = arith.constant 0 : i32
    %c0_i32_0 = arith.constant 0 : i32
    return %arg0, %c0_i32 : i32, i32
  }
  func.func @transform_5(%arg0: i32) -> (i32, i32) {
    %c0_i32 = arith.constant 0 : i32
    %c0_i32_0 = arith.constant 0 : i32
    return %arg0, %c0_i32 : i32, i32
  }
}

module attributes {stable_mosaic.version = 11 : i64} {
  func.func @_attn_kernel(%arg0: i32, %arg1: i32, %arg2: memref<1x8x32xf32, #tpu.memory_space<vmem>>, %arg3: memref<1x8x32xf32, #tpu.memory_space<vmem>>, %arg4: memref<1x8x32xf32, #tpu.memory_space<vmem>>, %arg5: memref<32x32xf32, #tpu.memory_space<vmem>>, %arg6: memref<1x32xf32, #tpu.memory_space<vmem>>, %arg7: memref<1x8x32xf32, #tpu.memory_space<vmem>>, %arg8: memref<1x8x8xf32, #tpu.memory_space<vmem>>) attributes {dimension_semantics = [#tpu.dimension_semantics<parallel>, #tpu.dimension_semantics<parallel>], iteration_bounds = array<i64: 2, 1>, scalar_prefetch = 0 : i64, scratch_operands = 0 : i64, tpu.core_type = #tpu.core_type<tc>, window_params = [{transform_indices = @transform_0, window_bounds = array<i64: 1, 8, 32>}, {transform_indices = @transform_1, window_bounds = array<i64: 1, 8, 32>}, {transform_indices = @transform_2, window_bounds = array<i64: 1, 8, 32>}, {pipeline_mode = #tpu.pipeline_mode<synchronous>, transform_indices = @transform_3, window_bounds = array<i64: 32, 32>}, {pipeline_mode = #tpu.pipeline_mode<synchronous>, transform_indices = @transform_4, window_bounds = array<i64: 1, 32>}, {transform_indices = @transform_5, window_bounds = array<i64: 1, 8, 32>}, {transform_indices = @transform_6, window_bounds = array<i64: 1, 8, 8>}]} {
    %c0 = arith.constant 0 : index
    %c0_0 = arith.constant 0 : index
    %c0_1 = arith.constant 0 : index
    %0 = vector.load %arg2[%c0, %c0_0, %c0_1] : memref<1x8x32xf32, #tpu.memory_space<vmem>>, vector<1x8x32xf32>
    %1 = vector.shape_cast %0 : vector<1x8x32xf32> to vector<8x32xf32>
    %c0_2 = arith.constant 0 : index
    %c0_3 = arith.constant 0 : index
    %c0_4 = arith.constant 0 : index
    %2 = vector.load %arg3[%c0_2, %c0_3, %c0_4] : memref<1x8x32xf32, #tpu.memory_space<vmem>>, vector<1x8x32xf32>
    %3 = vector.shape_cast %2 : vector<1x8x32xf32> to vector<8x32xf32>
    %c0_5 = arith.constant 0 : index
    %c0_6 = arith.constant 0 : index
    %c0_7 = arith.constant 0 : index
    %4 = vector.load %arg4[%c0_5, %c0_6, %c0_7] : memref<1x8x32xf32, #tpu.memory_space<vmem>>, vector<1x8x32xf32>
    %5 = vector.shape_cast %4 : vector<1x8x32xf32> to vector<8x32xf32>
    %6 = vector.extract_strided_slice %1 {offsets = [0, 0], sizes = [8, 8], strides = [1, 1]} : vector<8x32xf32> to vector<8x8xf32>
    %7 = vector.extract_strided_slice %3 {offsets = [0, 0], sizes = [8, 8], strides = [1, 1]} : vector<8x32xf32> to vector<8x8xf32>
    %8 = vector.extract_strided_slice %5 {offsets = [0, 0], sizes = [8, 8], strides = [1, 1]} : vector<8x32xf32> to vector<8x8xf32>
    "tpu.trace_start"() <{level = 10 : i32, message = "qd,kd->qk"}> : () -> ()
    %cst = arith.constant dense<0.000000e+00> : vector<8x8xf32>
    %9 = tpu.matmul %6, %7, %cst {dimension_numbers = #tpu.dot_dimension_numbers<[1], [1], [0], [0], [0, 0, 1, 0], [], []>} : vector<8x8xf32>, vector<8x8xf32>, vector<8x8xf32> -> vector<8x8xf32>
    "tpu.trace_stop"() : () -> ()
    %cst_8 = arith.constant dense<0xFF800000> : vector<8xf32>
    %10 = vector.multi_reduction <maximumf>, %9, %cst_8 [1] : vector<8x8xf32> to vector<8xf32>
    %11 = vector.shape_cast %10 : vector<8xf32> to vector<8x1xf32>
    %12 = vector.broadcast %11 : vector<8x1xf32> to vector<8x8xf32>
    %13 = arith.subf %9, %12 : vector<8x8xf32>
    %14 = math.exp %13 : vector<8x8xf32>
    %cst_9 = arith.constant dense<0.000000e+00> : vector<8xf32>
    %15 = vector.multi_reduction <add>, %14, %cst_9 [1] : vector<8x8xf32> to vector<8xf32>
    %16 = vector.shape_cast %15 : vector<8xf32> to vector<8x1xf32>
    %17 = vector.broadcast %16 : vector<8x1xf32> to vector<8x8xf32>
    %18 = arith.divf %14, %17 : vector<8x8xf32>
    %cst_10 = arith.constant dense<0.000000e+00> : vector<8x8xf32>
    %19 = tpu.matmul %18, %8, %cst_10 {dimension_numbers = #tpu.dot_dimension_numbers<[1], [0], [0], [1], [0, 0, 1, 1], [], []>} : vector<8x8xf32>, vector<8x8xf32>, vector<8x8xf32> -> vector<8x8xf32>
    %20 = vector.extract_strided_slice %1 {offsets = [0, 8], sizes = [8, 8], strides = [1, 1]} : vector<8x32xf32> to vector<8x8xf32>
    %21 = vector.extract_strided_slice %3 {offsets = [0, 8], sizes = [8, 8], strides = [1, 1]} : vector<8x32xf32> to vector<8x8xf32>
    %22 = vector.extract_strided_slice %5 {offsets = [0, 8], sizes = [8, 8], strides = [1, 1]} : vector<8x32xf32> to vector<8x8xf32>
    "tpu.trace_start"() <{level = 10 : i32, message = "qd,kd->qk"}> : () -> ()
    %cst_11 = arith.constant dense<0.000000e+00> : vector<8x8xf32>
    %23 = tpu.matmul %20, %21, %cst_11 {dimension_numbers = #tpu.dot_dimension_numbers<[1], [1], [0], [0], [0, 0, 1, 0], [], []>} : vector<8x8xf32>, vector<8x8xf32>, vector<8x8xf32> -> vector<8x8xf32>
    "tpu.trace_stop"() : () -> ()
    %cst_12 = arith.constant dense<0xFF800000> : vector<8xf32>
    %24 = vector.multi_reduction <maximumf>, %23, %cst_12 [1] : vector<8x8xf32> to vector<8xf32>
    %25 = vector.shape_cast %24 : vector<8xf32> to vector<8x1xf32>
    %26 = vector.broadcast %25 : vector<8x1xf32> to vector<8x8xf32>
    %27 = arith.subf %23, %26 : vector<8x8xf32>
    %28 = math.exp %27 : vector<8x8xf32>
    %cst_13 = arith.constant dense<0.000000e+00> : vector<8xf32>
    %29 = vector.multi_reduction <add>, %28, %cst_13 [1] : vector<8x8xf32> to vector<8xf32>
    %30 = vector.shape_cast %29 : vector<8xf32> to vector<8x1xf32>
    %31 = vector.broadcast %30 : vector<8x1xf32> to vector<8x8xf32>
    %32 = arith.divf %28, %31 : vector<8x8xf32>
    %cst_14 = arith.constant dense<0.000000e+00> : vector<8x8xf32>
    %33 = tpu.matmul %32, %22, %cst_14 {dimension_numbers = #tpu.dot_dimension_numbers<[1], [0], [0], [1], [0, 0, 1, 1], [], []>} : vector<8x8xf32>, vector<8x8xf32>, vector<8x8xf32> -> vector<8x8xf32>
    %34 = arith.addf %18, %32 : vector<8x8xf32>
    %35 = vector.extract_strided_slice %1 {offsets = [0, 16], sizes = [8, 8], strides = [1, 1]} : vector<8x32xf32> to vector<8x8xf32>
    %36 = vector.extract_strided_slice %3 {offsets = [0, 16], sizes = [8, 8], strides = [1, 1]} : vector<8x32xf32> to vector<8x8xf32>
    %37 = vector.extract_strided_slice %5 {offsets = [0, 16], sizes = [8, 8], strides = [1, 1]} : vector<8x32xf32> to vector<8x8xf32>
    "tpu.trace_start"() <{level = 10 : i32, message = "qd,kd->qk"}> : () -> ()
    %cst_15 = arith.constant dense<0.000000e+00> : vector<8x8xf32>
    %38 = tpu.matmul %35, %36, %cst_15 {dimension_numbers = #tpu.dot_dimension_numbers<[1], [1], [0], [0], [0, 0, 1, 0], [], []>} : vector<8x8xf32>, vector<8x8xf32>, vector<8x8xf32> -> vector<8x8xf32>
    "tpu.trace_stop"() : () -> ()
    %cst_16 = arith.constant dense<0xFF800000> : vector<8xf32>
    %39 = vector.multi_reduction <maximumf>, %38, %cst_16 [1] : vector<8x8xf32> to vector<8xf32>
    %40 = vector.shape_cast %39 : vector<8xf32> to vector<8x1xf32>
    %41 = vector.broadcast %40 : vector<8x1xf32> to vector<8x8xf32>
    %42 = arith.subf %38, %41 : vector<8x8xf32>
    %43 = math.exp %42 : vector<8x8xf32>
    %cst_17 = arith.constant dense<0.000000e+00> : vector<8xf32>
    %44 = vector.multi_reduction <add>, %43, %cst_17 [1] : vector<8x8xf32> to vector<8xf32>
    %45 = vector.shape_cast %44 : vector<8xf32> to vector<8x1xf32>
    %46 = vector.broadcast %45 : vector<8x1xf32> to vector<8x8xf32>
    %47 = arith.divf %43, %46 : vector<8x8xf32>
    %cst_18 = arith.constant dense<0.000000e+00> : vector<8x8xf32>
    %48 = tpu.matmul %47, %37, %cst_18 {dimension_numbers = #tpu.dot_dimension_numbers<[1], [0], [0], [1], [0, 0, 1, 1], [], []>} : vector<8x8xf32>, vector<8x8xf32>, vector<8x8xf32> -> vector<8x8xf32>
    %49 = arith.addf %34, %47 : vector<8x8xf32>
    %50 = vector.extract_strided_slice %1 {offsets = [0, 24], sizes = [8, 8], strides = [1, 1]} : vector<8x32xf32> to vector<8x8xf32>
    %51 = vector.extract_strided_slice %3 {offsets = [0, 24], sizes = [8, 8], strides = [1, 1]} : vector<8x32xf32> to vector<8x8xf32>
    %52 = vector.extract_strided_slice %5 {offsets = [0, 24], sizes = [8, 8], strides = [1, 1]} : vector<8x32xf32> to vector<8x8xf32>
    "tpu.trace_start"() <{level = 10 : i32, message = "qd,kd->qk"}> : () -> ()
    %cst_19 = arith.constant dense<0.000000e+00> : vector<8x8xf32>
    %53 = tpu.matmul %50, %51, %cst_19 {dimension_numbers = #tpu.dot_dimension_numbers<[1], [1], [0], [0], [0, 0, 1, 0], [], []>} : vector<8x8xf32>, vector<8x8xf32>, vector<8x8xf32> -> vector<8x8xf32>
    "tpu.trace_stop"() : () -> ()
    %cst_20 = arith.constant dense<0xFF800000> : vector<8xf32>
    %54 = vector.multi_reduction <maximumf>, %53, %cst_20 [1] : vector<8x8xf32> to vector<8xf32>
    %55 = vector.shape_cast %54 : vector<8xf32> to vector<8x1xf32>
    %56 = vector.broadcast %55 : vector<8x1xf32> to vector<8x8xf32>
    %57 = arith.subf %53, %56 : vector<8x8xf32>
    %58 = math.exp %57 : vector<8x8xf32>
    %cst_21 = arith.constant dense<0.000000e+00> : vector<8xf32>
    %59 = vector.multi_reduction <add>, %58, %cst_21 [1] : vector<8x8xf32> to vector<8xf32>
    %60 = vector.shape_cast %59 : vector<8xf32> to vector<8x1xf32>
    %61 = vector.broadcast %60 : vector<8x1xf32> to vector<8x8xf32>
    %62 = arith.divf %58, %61 : vector<8x8xf32>
    %cst_22 = arith.constant dense<0.000000e+00> : vector<8x8xf32>
    %63 = tpu.matmul %62, %52, %cst_22 {dimension_numbers = #tpu.dot_dimension_numbers<[1], [0], [0], [1], [0, 0, 1, 1], [], []>} : vector<8x8xf32>, vector<8x8xf32>, vector<8x8xf32> -> vector<8x8xf32>
    %64 = arith.addf %49, %62 : vector<8x8xf32>
    %65 = tpu.concatenate %19, %33, %48, %63 in 1 : vector<8x8xf32>, vector<8x8xf32>, vector<8x8xf32>, vector<8x8xf32> -> vector<8x32xf32>
    %c0_23 = arith.constant 0 : index
    %c0_24 = arith.constant 0 : index
    %66 = vector.load %arg5[%c0_23, %c0_24] : memref<32x32xf32, #tpu.memory_space<vmem>>, vector<32x32xf32>
    %cst_25 = arith.constant dense<0.000000e+00> : vector<8x32xf32>
    %67 = tpu.matmul %65, %66, %cst_25 {dimension_numbers = #tpu.dot_dimension_numbers<[1], [0], [0], [1], [0, 0, 1, 1], [], []>} : vector<8x32xf32>, vector<32x32xf32>, vector<8x32xf32> -> vector<8x32xf32>
    %c0_26 = arith.constant 0 : index
    %c0_27 = arith.constant 0 : index
    %68 = vector.load %arg6[%c0_26, %c0_27] : memref<1x32xf32, #tpu.memory_space<vmem>>, vector<1x32xf32>
    %69 = vector.broadcast %68 : vector<1x32xf32> to vector<8x32xf32>
    %70 = arith.addf %67, %69 : vector<8x32xf32>
    %c0_28 = arith.constant 0 : index
    %c0_29 = arith.constant 0 : index
    %c0_30 = arith.constant 0 : index
    %71 = vector.load %arg7[%c0_28, %c0_29, %c0_30] : memref<1x8x32xf32, #tpu.memory_space<vmem>>, vector<1x8x32xf32>
    %72 = vector.shape_cast %71 : vector<1x8x32xf32> to vector<8x32xf32>
    %73 = vector.shape_cast %70 : vector<8x32xf32> to vector<1x8x32xf32>
    tpu.vector_store %arg7[%c0_28, %c0_29, %c0_30], %73 {strides = array<i32>} : memref<1x8x32xf32, #tpu.memory_space<vmem>>, vector<1x8x32xf32>,
    %cst_31 = arith.constant 2.500000e-01 : f32
    %74 = vector.broadcast %cst_31 : f32 to vector<8x8xf32>
    %75 = arith.mulf %64, %74 : vector<8x8xf32>
    %c0_32 = arith.constant 0 : index
    %c0_33 = arith.constant 0 : index
    %c0_34 = arith.constant 0 : index
    %76 = vector.load %arg8[%c0_32, %c0_33, %c0_34] : memref<1x8x8xf32, #tpu.memory_space<vmem>>, vector<1x8x8xf32>
    %77 = vector.shape_cast %76 : vector<1x8x8xf32> to vector<8x8xf32>
    %78 = vector.shape_cast %75 : vector<8x8xf32> to vector<1x8x8xf32>
    tpu.vector_store %arg8[%c0_32, %c0_33, %c0_34], %78 {strides = array<i32>} : memref<1x8x8xf32, #tpu.memory_space<vmem>>, vector<1x8x8xf32>,
    return
  }
  func.func @transform_0(%arg0: i32, %arg1: i32) -> (i32, i32, i32) {
    %c0_i32 = arith.constant 0 : i32
    %c0_i32_0 = arith.constant 0 : i32
    return %arg0, %arg1, %c0_i32 : i32, i32, i32
  }
  func.func @transform_1(%arg0: i32, %arg1: i32) -> (i32, i32, i32) {
    %c0_i32 = arith.constant 0 : i32
    %c0_i32_0 = arith.constant 0 : i32
    %c0_i32_1 = arith.constant 0 : i32
    return %arg0, %c0_i32, %c0_i32_0 : i32, i32, i32
  }
  func.func @transform_2(%arg0: i32, %arg1: i32) -> (i32, i32, i32) {
    %c0_i32 = arith.constant 0 : i32
    %c0_i32_0 = arith.constant 0 : i32
    %c0_i32_1 = arith.constant 0 : i32
    return %arg0, %c0_i32, %c0_i32_0 : i32, i32, i32
  }
  func.func @transform_3(%arg0: i32, %arg1: i32) -> (i32, i32) {
    %c0_i32 = arith.constant 0 : i32
    %c0_i32_0 = arith.constant 0 : i32
    %c0_i32_1 = arith.constant 0 : i32
    return %c0_i32, %c0_i32_0 : i32, i32
  }
  func.func @transform_4(%arg0: i32, %arg1: i32) -> (i32, i32) {
    %c0_i32 = arith.constant 0 : i32
    %c0_i32_0 = arith.constant 0 : i32
    %c0_i32_1 = arith.constant 0 : i32
    return %c0_i32, %c0_i32_0 : i32, i32
  }
  func.func @transform_5(%arg0: i32, %arg1: i32) -> (i32, i32, i32) {
    %c0_i32 = arith.constant 0 : i32
    %c0_i32_0 = arith.constant 0 : i32
    return %arg0, %arg1, %c0_i32 : i32, i32, i32
  }
  func.func @transform_6(%arg0: i32, %arg1: i32) -> (i32, i32, i32) {
    %c0_i32 = arith.constant 0 : i32
    %c0_i32_0 = arith.constant 0 : i32
    return %arg0, %arg1, %c0_i32 : i32, i32, i32
  }
}

</mosaic_0001>

<llo_original>
// kernel: multihead_attention_fwd.2
$region0: #{multihead_attention_fwd.2}
  #allocation0 [shape = 'u32[]', space=smem, size = 0x4, offset = 0x4, fixed_abs, tag = 'smem constant byte address 0x4 - core index']
  #allocation1 [shape = 'u32[144,128]{1,0:T(1,128)}', space=vmem, size = 0x12000, scoped, tag = 'internal scratch']
  %s0 = inlined_call_operand.vmem [shape: f32[16,32], index: 0, kind: input, shape index: {}]
  %s1 = inlined_call_operand.vmem [shape: f32[32,96], index: 1, kind: input, shape index: {}]
  %s2 = inlined_call_operand.vmem [shape: f32[1,96], index: 2, kind: input, shape index: {}]
  %s3 = inlined_call_operand.vmem [shape: f32[16,32], index: 3, kind: output, shape index: {0}]
  %s4 = inlined_call_operand.vmem [shape: f32[16,32], index: 4, kind: output, shape index: {1}]
  %s5 = inlined_call_operand.vmem [shape: f32[16,32], index: 5, kind: output, shape index: {2}]
  %6 = xla_tuple %s3, %s4, %s5
  %s7 = sld [smem:[#allocation0]]
  $region38: #{multihead_attention_fwd.2} parent=0
    _
  %s9 = ssub.s32 1, %s7
  %s10 = scalar_select 0, %s9, %s7
  // Predicated region
  $region2: #{multihead_attention_fwd.2} parent=0 // pred_check
    _
  $region3: #{multihead_attention_fwd.2} parent=0 // pred_check_branch
    %12 = sbr.rel (0) target = $region5
  $region4: #{multihead_attention_fwd.2} parent=0 // pred_region
    _
  $region5: #{multihead_attention_fwd.2} parent=0 // pred_fallthru
    _
  // Predicated region
  $region6: #{multihead_attention_fwd.2} parent=0 // pred_check
    _
  $region7: #{multihead_attention_fwd.2} parent=0 // pred_check_branch
    %14 = sbr.rel (0) target = $region9
  $region8: #{multihead_attention_fwd.2} parent=0 // pred_region
    _
  $region9: #{multihead_attention_fwd.2} parent=0 // pred_fallthru
    _
  // Predicated region
  $region10: #{multihead_attention_fwd.2} parent=0 // pred_check
    _
  $region11: #{multihead_attention_fwd.2} parent=0 // pred_check_branch
    %16 = sbr.rel (0) target = $region13
  $region12: #{multihead_attention_fwd.2} parent=0 // pred_region
    _
  $region13: #{multihead_attention_fwd.2} parent=0 // pred_fallthru
    _
  %v17 = vld [vmem:[%s0] sm:$0xff]
  %v18 = vld [vmem:[%s0 + $0x8] sm:$0xff]
  %v19 = vld [vmem:[%s1] sm:$0xff]
  %v20 = vld [vmem:[%s1 + $0x8] sm:$0xff]
  %v21 = vld [vmem:[%s1 + $0x10] sm:$0xff]
  %v22 = vld [vmem:[%s1 + $0x18] sm:$0xff]
  %v23 = vld [vmem:[%s2] sm:$0x1]
  %v25 = vlaneseq
  %v26 = vshrl.u32 %v25, 7
  %v27 = vsub.s32 0, %v26
  %v28 = vrot.slane %v23, %v27
  %vm30 = vcmask 261120
  %v32 = vsel %vm30, %v17, 0
  %v35 = vsel %vm30, %v18, 0
  %37 = vmatprep.subr.mxu0 0.0
  %38 = vmatpush1.msra.mxu0 %v19
  %39 = vmatprep.subr.mxu0 0.0
  %40 = vmatpush1.msra.mxu0 %v20
  %41 = vmatprep.subr.mxu0 0.0
  %42 = vmatpush1.msra.mxu0 %v21
  %43 = vmatprep.subr.mxu0 0.0
  %44 = vmatpush1.msra.mxu0 %v22
  %45 = vmatprep.subr.mxu0 0.0
  %46 = vmatpush1.msra.mxu0 0.0
  %47 = vmatprep.subr.mxu0 0.0
  %48 = vmatpush1.msra.mxu0 0.0
  %49 = vmatprep.subr.mxu0 0.0
  %50 = vmatpush1.msra.mxu0 0.0
  %51 = vmatprep.subr.mxu0 0.0
  %52 = vmatpush1.msra.mxu0 0.0
  %53 = vmatprep.subr.mxu0 0.0
  %54 = vmatpush1.msra.mxu0 0.0
  %55 = vmatprep.subr.mxu0 0.0
  %56 = vmatpush1.msra.mxu0 0.0
  %57 = vmatprep.subr.mxu0 0.0
  %58 = vmatpush1.msra.mxu0 0.0
  %59 = vmatprep.subr.mxu0 0.0
  %60 = vmatpush1.msra.mxu0 0.0
  %61 = vmatprep.subr.mxu0 0.0
  %62 = vmatpush1.msra.mxu0 0.0
  %63 = vmatprep.subr.mxu0 0.0
  %64 = vmatpush1.msra.mxu0 0.0
  %65 = vmatprep.subr.mxu0 0.0
  %66 = vmatpush1.msra.mxu0 0.0
  %67 = vmatprep.subr.mxu0 0.0
  %68 = vmatpush1.msra.mxu0 0.0
  %69 = vmatprep.subr.mxu0 0.0
  %70 = vmatpush1.msra.mxu0 0.0
  %71 = vmatprep.subr.mxu0 0.0
  %72 = vmatpush1.msra.mxu0 0.0
  %73 = vmatprep.subr.mxu0 0.0
  %74 = vmatpush1.msra.mxu0 0.0
  %75 = vmatprep.subr.mxu0 0.0
  %76 = vmatpush1.msra.mxu0 0.0
  %77 = vmatprep.subr.mxu0 0.0
  %78 = vmatpush1.msra.mxu0 0.0
  %79 = vmatprep.subr.mxu0 0.0
  %80 = vmatpush1.msra.mxu0 0.0
  %81 = vmatprep.subr.mxu0 0.0
  %82 = vmatpush1.msra.mxu0 0.0
  %83 = vmatprep.subr.mxu0 0.0
  %84 = vmatpush1.msra.mxu0 0.0
  %85 = vmatprep.subr.mxu0 0.0
  %86 = vmatpush1.msra.mxu0 0.0
  %87 = vmatprep.subr.mxu0 0.0
  %88 = vmatpush1.msra.mxu0 0.0
  %89 = vmatprep.subr.mxu0 0.0
  %90 = vmatpush1.msra.mxu0 0.0
  %91 = vmatprep.subr.mxu0 0.0
  %92 = vmatpush1.msra.mxu0 0.0
  %93 = vmatprep.subr.mxu0 0.0
  %94 = vmatpush1.msra.mxu0 0.0
  %95 = vmatprep.subr.mxu0 0.0
  %96 = vmatpush1.msra.mxu0 0.0
  %97 = vmatprep.subr.mxu0 0.0
  %98 = vmatpush1.msra.mxu0 0.0
  %99 = vmatprep.subr.mxu0 0.0
  %100 = vmatpush1.msra.mxu0 0.0
  %101 = vmatprep.mubr.f32.mxu0 0.0
  %102 = vmatmul.mubr.f32.gmra.mrb[0].mxu0 %v32
  %v103 = vpop.f32.mrb[0].mxu0
  %v104 = vadd.f32 %v28, %v103
  %v105 = vpop.f32.mrb[0].mxu0
  %106 = vmatprep.mubr.f32.mxu0 0.0
  %107 = vmatmul.mubr.f32.gmra.mrb[0].mxu0 %v35
  %v108 = vpop.f32.mrb[0].mxu0
  %v109 = vadd.f32 %v28, %v108
  %v110 = vpop.f32.mrb[0].mxu0
  %111 = vdwg.mxu0
  %112 = vst.msk [vmem:[%s3] sm:$0xff] %vm30, %v104
  %113 = vst.msk [vmem:[%s3 + $0x8] sm:$0xff] %vm30, %v109
  %116 = vrot.lane.b32.xlu0 %v104, 96
  %v117 = vpop.permute.xlu0 %116
  %118 = vrot.lane.b32.xlu0 %v109, 96
  %v119 = vpop.permute.xlu0 %118
  %122 = vst.msk [vmem:[%s4] sm:$0xff] %vm30, %v117
  %123 = vst.msk [vmem:[%s4 + $0x8] sm:$0xff] %vm30, %v119
  %124 = vrot.lane.b32.xlu0 %v104, 64
  %v125 = vpop.permute.xlu0 %124
  %126 = vrot.lane.b32.xlu0 %v109, 64
  %v127 = vpop.permute.xlu0 %126
  %130 = vst.msk [vmem:[%s5] sm:$0xff] %vm30, %v125
  %131 = vst.msk [vmem:[%s5 + $0x8] sm:$0xff] %vm30, %v127
  // Predicated region
  $region14: #{multihead_attention_fwd.2} parent=0 // pred_check
    _
  $region15: #{multihead_attention_fwd.2} parent=0 // pred_check_branch
    %133 = sbr.rel (0) target = $region17
  $region16: #{multihead_attention_fwd.2} parent=0 // pred_region
    _
  $region17: #{multihead_attention_fwd.2} parent=0 // pred_fallthru
    _
  // Predicated region
  $region18: #{multihead_attention_fwd.2} parent=0 // pred_check
    _
  $region19: #{multihead_attention_fwd.2} parent=0 // pred_check_branch
    %135 = sbr.rel (0) target = $region21
  $region20: #{multihead_attention_fwd.2} parent=0 // pred_region
    _
  $region21: #{multihead_attention_fwd.2} parent=0 // pred_fallthru
    _
  // Predicated region
  $region22: #{multihead_attention_fwd.2} parent=0 // pred_check
    _
  $region23: #{multihead_attention_fwd.2} parent=0 // pred_check_branch
    %137 = sbr.rel (0) target = $region25
  $region24: #{multihead_attention_fwd.2} parent=0 // pred_region
    _
  $region25: #{multihead_attention_fwd.2} parent=0 // pred_fallthru
    _
  // Predicated region
  $region26: #{multihead_attention_fwd.2} parent=0 // pred_check
    _
  $region27: #{multihead_attention_fwd.2} parent=0 // pred_check_branch
    %139 = sbr.rel (0) target = $region29
  $region28: #{multihead_attention_fwd.2} parent=0 // pred_region
    _
  $region29: #{multihead_attention_fwd.2} parent=0 // pred_fallthru
    _
  // Predicated region
  $region30: #{multihead_attention_fwd.2} parent=0 // pred_check
    _
  $region31: #{multihead_attention_fwd.2} parent=0 // pred_check_branch
    %141 = sbr.rel (0) target = $region33
  $region32: #{multihead_attention_fwd.2} parent=0 // pred_region
    _
  $region33: #{multihead_attention_fwd.2} parent=0 // pred_fallthru
    _
  // Predicated region
  $region34: #{multihead_attention_fwd.2} parent=0 // pred_check
    _
  $region35: #{multihead_attention_fwd.2} parent=0 // pred_check_branch
    %143 = sbr.rel (0) target = $region37
  $region36: #{multihead_attention_fwd.2} parent=0 // pred_region
    _
  $region37: #{multihead_attention_fwd.2} parent=0 // pred_fallthru
    _

// kernel: multihead_attention_fwd.3
$region0: #{multihead_attention_fwd.3}
  #allocation0 [shape = 'u32[]', space=smem, size = 0x4, offset = 0x4, fixed_abs, tag = 'smem constant byte address 0x4 - core index']
  #allocation1 [shape = 'u32[144,128]{1,0:T(1,128)}', space=vmem, size = 0x12000, scoped, tag = 'internal scratch']
  %s0 = inlined_call_operand.vmem [shape: f32[2,8,32], index: 0, kind: input, shape index: {}]
  %s1 = inlined_call_operand.vmem [shape: f32[2,8,32], index: 1, kind: input, shape index: {}]
  %s2 = inlined_call_operand.vmem [shape: f32[2,8,32], index: 2, kind: input, shape index: {}]
  %s3 = inlined_call_operand.vmem [shape: f32[32,32], index: 3, kind: input, shape index: {}]
  %s4 = inlined_call_operand.vmem [shape: f32[1,32], index: 4, kind: input, shape index: {}]
  %s5 = inlined_call_operand.vmem [shape: f32[2,8,32], index: 5, kind: output, shape index: {0}]
  %s6 = inlined_call_operand.hbm [shape: f32[2,8,8], index: 6, kind: output, shape index: {1}]
  %7 = xla_tuple %s5, %s6
  %s8 = sld [smem:[#allocation0]]
  $region61: #{multihead_attention_fwd.3} parent=0
    _
  %s10 = ssub.s32 1, %s8
  %s11 = scalar_select 0, %s10, %s8
  $region1: #{multihead_attention_fwd.3} parent=0
    #allocation2 [shape = 'u8[8192]{0}', space=vmem, size = 0x2000, scoped, tag = 'output window, operand 1']
    #allocation3 [shape = 's32[2]{0}', space=sflag, size = 0x8, scoped, tag = 'scoped memory for multihead_attention_fwd.3']
    %12 = vsyncpa [#allocation3], 0
    %s13 = scalar_lea.sflag [#allocation3], 1
    %14 = vsyncpa %s13, 0
    loop: start=0, step=1, limit=4
    $region2: #{multihead_attention_fwd.3} parent=1 // loop_pre_header
      _
    $region3: #{multihead_attention_fwd.3} parent=1 // loop_header
      %s16 = sphi 0, %s20
      %p17 = scmp.ge.s32.totalorder %s16, 4
      %s23 = sphi 0, %s35
      %s24 = sphi 0, %s31
      %s25 = sphi 0, %s23
      %s26 = sphi 0, %s24
      %s27 = sphi 0, %s25
      %s28 = sphi 0, %s26
      %s40 = sphi 0, %s42
      %s43 = sphi 0, %s40
      %s44 = sphi 0, %s43
      %s60 = sphi 0, %s44
      %s66 = sphi 0, %s68
      %s69 = sphi 0, %s66
      %s70 = sphi 0, %s69
      %s86 = sphi 0, %s70
      %s92 = sphi 0, %s94
      %s95 = sphi 0, %s92
      %s96 = sphi 0, %s95
      %s112 = sphi 0, %s96
      %s116 = sphi 0, %s116
      %s118 = sphi 0, %s116
      %s119 = sphi 0, %s118
      %s133 = sphi 0, %s119
      %s137 = sphi 0, %s137
      %s139 = sphi 0, %s137
      %s140 = sphi 0, %s139
      %s154 = sphi 0, %s140
      %s162 = sphi 0, %s164
      %s165 = sphi 0, %s162
      %s166 = sphi 0, %s165
      %s182 = sphi 0, %s166
      %s190 = sphi 0, %s192
      %s193 = sphi 0, %s190
      %s194 = sphi 0, %s193
      %s210 = sphi 0, %s194
    $region4: #{multihead_attention_fwd.3} parent=1 // loop_header_branch
      %19 = sbr.rel (%p17) target = $region8
    $region5: #{multihead_attention_fwd.3} parent=1 // loop_body
      %s21 = ssub.s32 %s16, 1
      %s22 = ssub.s32 %s16, 2
      %s29 = sadd.s32 1, %s24
      %p30 = scmp.ge.s32.totalorder %s29, 1
      %s31 = scalar_select %p30, 0, %s29
      %s32 = sadd.s32 1, %s23
      %s33 = scalar_select %p30, %s32, %s23
      %p34 = scmp.ge.s32.totalorder %s33, 2
      %s35 = scalar_select %p34, 0, %s33
      %s36 = ssub.s32 %s23, %s35
      %s37 = ssub.s32 %s24, %s31
      %s38 = sor.u32 %s36, %s37
      %p39 = scmp.eq.s32.totalorder %s38, 0
      %s41 = sadd.s32 %s40, 1
      %s42 = scalar_select %p39, %s40, %s41
      %p45 = pneg %p39
      %p46 = scmp.eq.s32.totalorder %s16, 1
      %p47 = por %p45, %p46
      %p48 = scmp.ne.s32.totalorder %s40, %s43
      %p49 = scmp.eq.s32.totalorder %s16, 0
      %p50 = por %p48, %p49
      %p51 = scmp.ne.s32.totalorder %s40, %s43
      %p52 = scmp.eq.s32.totalorder %s21, 1
      %p53 = por %p51, %p52
      %p54 = scmp.ne.s32.totalorder %s43, %s44
      %p55 = scmp.eq.s32.totalorder %s21, 0
      %p56 = por %p54, %p55
      %p57 = scmp.ne.s32.totalorder %s43, %s44
      %p58 = scmp.eq.s32.totalorder %s22, 1
      %p59 = por %p57, %p58
      %p61 = scmp.ne.s32.totalorder %s44, %s60
      %p62 = scmp.eq.s32.totalorder %s22, 0
      %p63 = por %p61, %p62
      %s64 = ssub.s32 %s23, %s35
      %p65 = scmp.eq.s32.totalorder %s64, 0
      %s67 = sadd.s32 %s66, 1
      %s68 = scalar_select %p65, %s66, %s67
      %p71 = pneg %p65
      %p72 = scmp.eq.s32.totalorder %s16, 1
      %p73 = por %p71, %p72
      %p74 = scmp.ne.s32.totalorder %s66, %s69
      %p75 = scmp.eq.s32.totalorder %s16, 0
      %p76 = por %p74, %p75
      %p77 = scmp.ne.s32.totalorder %s66, %s69
      %p78 = scmp.eq.s32.totalorder %s21, 1
      %p79 = por %p77, %p78
      %p80 = scmp.ne.s32.totalorder %s69, %s70
      %p81 = scmp.eq.s32.totalorder %s21, 0
      %p82 = por %p80, %p81
      %p83 = scmp.ne.s32.totalorder %s69, %s70
      %p84 = scmp.eq.s32.totalorder %s22, 1
      %p85 = por %p83, %p84
      %p87 = scmp.ne.s32.totalorder %s70, %s86
      %p88 = scmp.eq.s32.totalorder %s22, 0
      %p89 = por %p87, %p88
      %s90 = ssub.s32 %s23, %s35
      %p91 = scmp.eq.s32.totalorder %s90, 0
      %s93 = sadd.s32 %s92, 1
      %s94 = scalar_select %p91, %s92, %s93
      %p97 = pneg %p91
      %p98 = scmp.eq.s32.totalorder %s16, 1
      %p99 = por %p97, %p98
      %p100 = scmp.ne.s32.totalorder %s92, %s95
      %p101 = scmp.eq.s32.totalorder %s16, 0
      %p102 = por %p100, %p101
      %p103 = scmp.ne.s32.totalorder %s92, %s95
      %p104 = scmp.eq.s32.totalorder %s21, 1
      %p105 = por %p103, %p104
      %p106 = scmp.ne.s32.totalorder %s95, %s96
      %p107 = scmp.eq.s32.totalorder %s21, 0
      %p108 = por %p106, %p107
      %p109 = scmp.ne.s32.totalorder %s95, %s96
      %p110 = scmp.eq.s32.totalorder %s22, 1
      %p111 = por %p109, %p110
      %p113 = scmp.ne.s32.totalorder %s96, %s112
      %p114 = scmp.eq.s32.totalorder %s22, 0
      %p115 = por %p113, %p114
      %s117 = sadd.s32 %s116, 1
      %p120 = scmp.eq.s32.totalorder %s16, 1
      %p121 = scmp.ne.s32.totalorder %s116, %s118
      %p122 = scmp.eq.s32.totalorder %s16, 0
      %p123 = por %p121, %p122
      %p124 = scmp.ne.s32.totalorder %s116, %s118
      %p125 = scmp.eq.s32.totalorder %s21, 1
      %p126 = por %p124, %p125
      %p127 = scmp.ne.s32.totalorder %s118, %s119
      %p128 = scmp.eq.s32.totalorder %s21, 0
      %p129 = por %p127, %p128
      %p130 = scmp.ne.s32.totalorder %s118, %s119
      %p131 = scmp.eq.s32.totalorder %s22, 1
      %p132 = por %p130, %p131
      %p134 = scmp.ne.s32.totalorder %s119, %s133
      %p135 = scmp.eq.s32.totalorder %s22, 0
      %p136 = por %p134, %p135
      %s138 = sadd.s32 %s137, 1
      %p141 = scmp.eq.s32.totalorder %s16, 1
      %p142 = scmp.ne.s32.totalorder %s137, %s139
      %p143 = scmp.eq.s32.totalorder %s16, 0
      %p144 = por %p142, %p143
      %p145 = scmp.ne.s32.totalorder %s137, %s139
      %p146 = scmp.eq.s32.totalorder %s21, 1
      %p147 = por %p145, %p146
      %p148 = scmp.ne.s32.totalorder %s139, %s140
      %p149 = scmp.eq.s32.totalorder %s21, 0
      %p150 = por %p148, %p149
      %p151 = scmp.ne.s32.totalorder %s139, %s140
      %p152 = scmp.eq.s32.totalorder %s22, 1
      %p153 = por %p151, %p152
      %p155 = scmp.ne.s32.totalorder %s140, %s154
      %p156 = scmp.eq.s32.totalorder %s22, 0
      %p157 = por %p155, %p156
      %s158 = ssub.s32 %s23, %s35
      %s159 = ssub.s32 %s24, %s31
      %s160 = sor.u32 %s158, %s159
      %p161 = scmp.eq.s32.totalorder %s160, 0
      %s163 = sadd.s32 %s162, 1
      %s164 = scalar_select %p161, %s162, %s163
      %p167 = pneg %p161
      %p168 = scmp.eq.s32.totalorder %s16, 1
      %p169 = por %p167, %p168
      %p170 = scmp.ne.s32.totalorder %s162, %s165
      %p171 = scmp.eq.s32.totalorder %s16, 0
      %p172 = por %p170, %p171
      %p173 = scmp.ne.s32.totalorder %s162, %s165
      %p174 = scmp.eq.s32.totalorder %s21, 1
      %p175 = por %p173, %p174
      %p176 = scmp.ne.s32.totalorder %s165, %s166
      %p177 = scmp.eq.s32.totalorder %s21, 0
      %p178 = por %p176, %p177
      %p179 = scmp.ne.s32.totalorder %s165, %s166
      %p180 = scmp.eq.s32.totalorder %s22, 1
      %p181 = por %p179, %p180
      %p183 = scmp.ne.s32.totalorder %s166, %s182
      %p184 = scmp.eq.s32.totalorder %s22, 0
      %p185 = por %p183, %p184
      %s186 = ssub.s32 %s23, %s35
      %s187 = ssub.s32 %s24, %s31
      %s188 = sor.u32 %s186, %s187
      %p189 = scmp.eq.s32.totalorder %s188, 0
      %s191 = sadd.s32 %s190, 1
      %s192 = scalar_select %p189, %s190, %s191
      %p195 = pneg %p189
      %p196 = scmp.eq.s32.totalorder %s16, 1
      %p197 = por %p195, %p196
      %p198 = scmp.ne.s32.totalorder %s190, %s193
      %p199 = scmp.eq.s32.totalorder %s16, 0
      %p200 = por %p198, %p199
      %p201 = scmp.ne.s32.totalorder %s190, %s193
      %p202 = scmp.eq.s32.totalorder %s21, 1
      %p203 = por %p201, %p202
      %p204 = scmp.ne.s32.totalorder %s193, %s194
      %p205 = scmp.eq.s32.totalorder %s21, 0
      %p206 = por %p204, %p205
      %p207 = scmp.ne.s32.totalorder %s193, %s194
      %p208 = scmp.eq.s32.totalorder %s22, 1
      %p209 = por %p207, %p208
      %p211 = scmp.ne.s32.totalorder %s194, %s210
      %p212 = scmp.eq.s32.totalorder %s22, 0
      %p213 = por %p211, %p212
      %p214 = scmp.le.s32.totalorder 1, %s16
      %p215 = scmp.lt.s32.totalorder %s16, 3
      %p216 = pnand %p214, %p215
      %p217 = pneg %p216
      // Predicated region
      $region9: #{multihead_attention_fwd.3} parent=5 // pred_check
        _
      $region10: #{multihead_attention_fwd.3} parent=5 // pred_check_branch
        %219 = sbr.rel (%p216) target = $region12
      $region11: #{multihead_attention_fwd.3} parent=5 // pred_region
        %s220 = ssub.s32 %s16, 1
        // Predicated region
        $region13: #{multihead_attention_fwd.3} parent=11 // pred_check
          %p221 = pneg %p129
        $region14: #{multihead_attention_fwd.3} parent=11 // pred_check_branch
          %223 = sbr.rel (%p221) target = $region16
        $region15: #{multihead_attention_fwd.3} parent=11 // pred_region
          _
        $region16: #{multihead_attention_fwd.3} parent=11 // pred_fallthru
          _
        // Predicated region
        $region17: #{multihead_attention_fwd.3} parent=11 // pred_check
          %p224 = pneg %p150
        $region18: #{multihead_attention_fwd.3} parent=11 // pred_check_branch
          %226 = sbr.rel (%p224) target = $region20
        $region19: #{multihead_attention_fwd.3} parent=11 // pred_region
          _
        $region20: #{multihead_attention_fwd.3} parent=11 // pred_fallthru
          _
      $region12: #{multihead_attention_fwd.3} parent=5 // pred_fallthru
        _
      %p227 = scmp.lt.s32.totalorder %s16, 2
      // Predicated region
      $region21: #{multihead_attention_fwd.3} parent=5 // pred_check
        %p228 = pneg %p227
      $region22: #{multihead_attention_fwd.3} parent=5 // pred_check_branch
        %230 = sbr.rel (%p228) target = $region24
      $region23: #{multihead_attention_fwd.3} parent=5 // pred_region
        // Predicated region
        $region25: #{multihead_attention_fwd.3} parent=23 // pred_check
          %p231 = pneg %p50
        $region26: #{multihead_attention_fwd.3} parent=23 // pred_check_branch
          %233 = sbr.rel (%p231) target = $region28
        $region27: #{multihead_attention_fwd.3} parent=23 // pred_region
          %p234 = scmp.lt.s32.totalorder %s23, 1
          %s235 = scalar_select %p234, %s23, 1
          %p236 = scmp.lt.s32.totalorder %s24, 0
          %s237 = scalar_select %p236, %s24, 0
          %s238 = sadd.s32 %s237, %s235
          %s239 = smul.addr %s238, 8
          %s240 = scalar_lea.vmem %s0, %s239
        $region28: #{multihead_attention_fwd.3} parent=23 // pred_fallthru
          _
        // Predicated region
        $region29: #{multihead_attention_fwd.3} parent=23 // pred_check
          %p241 = pneg %p76
        $region30: #{multihead_attention_fwd.3} parent=23 // pred_check_branch
          %243 = sbr.rel (%p241) target = $region32
        $region31: #{multihead_attention_fwd.3} parent=23 // pred_region
          %p244 = scmp.lt.s32.totalorder %s23, 1
          %s245 = scalar_select %p244, %s23, 1
          %s246 = smul.addr %s245, 8
          %s247 = scalar_lea.vmem %s1, %s246
        $region32: #{multihead_attention_fwd.3} parent=23 // pred_fallthru
          _
        // Predicated region
        $region33: #{multihead_attention_fwd.3} parent=23 // pred_check
          %p248 = pneg %p102
        $region34: #{multihead_attention_fwd.3} parent=23 // pred_check_branch
          %250 = sbr.rel (%p248) target = $region36
        $region35: #{multihead_attention_fwd.3} parent=23 // pred_region
          %p251 = scmp.lt.s32.totalorder %s23, 1
          %s252 = scalar_select %p251, %s23, 1
          %s253 = smul.addr %s252, 8
          %s254 = scalar_lea.vmem %s2, %s253
        $region36: #{multihead_attention_fwd.3} parent=23 // pred_fallthru
          _
      $region24: #{multihead_attention_fwd.3} parent=5 // pred_fallthru
        _
      %p255 = scmp.le.s32.totalorder 1, %s16
      %p256 = scmp.lt.s32.totalorder %s16, 3
      %p257 = pnand %p255, %p256
      %p258 = pneg %p257
      // Predicated region
      $region37: #{multihead_attention_fwd.3} parent=5 // pred_check
        _
      $region38: #{multihead_attention_fwd.3} parent=5 // pred_check_branch
        %260 = sbr.rel (%p257) target = $region40
      $region39: #{multihead_attention_fwd.3} parent=5 // pred_region
        %s261 = ssub.s32 %s16, 1
        %p262 = scmp.lt.s32.totalorder %s25, 1
        %s263 = scalar_select %p262, %s25, 1
        %p264 = scmp.lt.s32.totalorder %s26, 0
        %s265 = scalar_select %p264, %s26, 0
        %s266 = sadd.s32 %s265, %s263
        %s267 = smul.addr %s266, 8
        %s268 = scalar_lea.vmem %s0, %s267
        %p269 = pneg %p56
        %p270 = pneg %p53
        %p271 = scmp.lt.s32.totalorder %s25, 1
        %s272 = scalar_select %p271, %s25, 1
        %s273 = smul.addr %s272, 8
        %s274 = scalar_lea.vmem %s1, %s273
        %p275 = pneg %p82
        %p276 = pneg %p79
        %p277 = scmp.lt.s32.totalorder %s25, 1
        %s278 = scalar_select %p277, %s25, 1
        %s279 = smul.addr %s278, 8
        %s280 = scalar_lea.vmem %s2, %s279
        %p281 = pneg %p108
        %p282 = pneg %p105
        %p283 = pneg %p129
        %p284 = pneg %p126
        %p285 = pneg %p150
        %p286 = pneg %p147
        %p287 = pneg %p178
        %p288 = pneg %p175
        %p289 = scmp.lt.s32.totalorder %s25, 1
        %s290 = scalar_select %p289, %s25, 1
        %p291 = scmp.lt.s32.totalorder %s26, 0
        %s292 = scalar_select %p291, %s26, 0
        %s293 = sadd.s32 %s292, %s290
        %s294 = smul.addr %s293, 8
        %s295 = scalar_lea.vmem %s5, %s294
        %p296 = pneg %p206
        %p297 = pneg %p203
        %s298 = sand.u32 %s193, 1
        %s299 = scalar_lea.sflag [#allocation3], %s298
        %s300 = sand.u32 %s193, 1
        %s301 = smul.addr %s300, 8
        %s302 = scalar_lea.vmem [#allocation2], %s301
        %p303 = scmp.lt.s32.totalorder %s25, 1
        %s304 = scalar_select %p303, %s25, 1
        %p305 = scmp.lt.s32.totalorder %s26, 0
        %s306 = scalar_select %p305, %s26, 0
        %s307 = sadd.s32 %s306, %s304
        %s308 = smul.addr %s307, 8
        %s309 = scalar_lea.vmem %s0, %s308
        %p310 = scmp.lt.s32.totalorder %s25, 1
        %s311 = scalar_select %p310, %s25, 1
        %s312 = smul.addr %s311, 8
        %s313 = scalar_lea.vmem %s1, %s312
        %p314 = scmp.lt.s32.totalorder %s25, 1
        %s315 = scalar_select %p314, %s25, 1
        %s316 = smul.addr %s315, 8
        %s317 = scalar_lea.vmem %s2, %s316
        %p318 = scmp.lt.s32.totalorder %s25, 1
        %s319 = scalar_select %p318, %s25, 1
        %p320 = scmp.lt.s32.totalorder %s26, 0
        %s321 = scalar_select %p320, %s26, 0
        %s322 = sadd.s32 %s321, %s319
        %s323 = smul.addr %s322, 8
        %s324 = scalar_lea.vmem %s5, %s323
        %v325 = vld [vmem:[%s309] sm:$0xff]
        %v326 = vld [vmem:[%s313] sm:$0xff]
        %v327 = vld [vmem:[%s317] sm:$0xff]
        %vm328 = vcmask 64512
        %v330 = vsel %vm328, %v325, 0
        %v333 = vsel %vm328, %v326, 0
        %335 = vmatprep.subr.mxu0 0.0
        %336 = vmatpush1.xpose.msra.mxu0 %v333
        %337 = vmatprep.subr.mxu0 0.0
        %338 = vmatpush1.xpose.msra.mxu0 0.0
        %339 = vmatprep.subr.mxu0 0.0
        %340 = vmatpush1.xpose.msra.mxu0 0.0
        %341 = vmatprep.subr.mxu0 0.0
        %342 = vmatpush1.xpose.msra.mxu0 0.0
        %343 = vmatprep.subr.mxu0 0.0
        %344 = vmatpush1.xpose.msra.mxu0 0.0
        %345 = vmatprep.subr.mxu0 0.0
        %346 = vmatpush1.xpose.msra.mxu0 0.0
        %347 = vmatprep.subr.mxu0 0.0
        %348 = vmatpush1.xpose.msra.mxu0 0.0
        %349 = vmatprep.subr.mxu0 0.0
        %350 = vmatpush1.xpose.msra.mxu0 0.0
        %351 = vmatprep.subr.mxu0 0.0
        %352 = vmatpush1.xpose.msra.mxu0 0.0
        %353 = vmatprep.subr.mxu0 0.0
        %354 = vmatpush1.xpose.msra.mxu0 0.0
        %355 = vmatprep.subr.mxu0 0.0
        %356 = vmatpush1.xpose.msra.mxu0 0.0
        %357 = vmatprep.subr.mxu0 0.0
        %358 = vmatpush1.xpose.msra.mxu0 0.0
        %359 = vmatprep.subr.mxu0 0.0
        %360 = vmatpush1.xpose.msra.mxu0 0.0
        %361 = vmatprep.subr.mxu0 0.0
        %362 = vmatpush1.xpose.msra.mxu0 0.0
        %363 = vmatprep.subr.mxu0 0.0
        %364 = vmatpush1.xpose.msra.mxu0 0.0
        %365 = vmatprep.subr.mxu0 0.0
        %366 = vmatpush1.xpose.msra.mxu0 0.0
        %367 = vmatprep.subr.mxu0 0.0
        %368 = vmatpush1.xpose.msra.mxu0 0.0
        %369 = vmatprep.subr.mxu0 0.0
        %370 = vmatpush1.xpose.msra.mxu0 0.0
        %371 = vmatprep.subr.mxu0 0.0
        %372 = vmatpush1.xpose.msra.mxu0 0.0
        %373 = vmatprep.subr.mxu0 0.0
        %374 = vmatpush1.xpose.msra.mxu0 0.0
        %375 = vmatprep.subr.mxu0 0.0
        %376 = vmatpush1.xpose.msra.mxu0 0.0
        %377 = vmatprep.subr.mxu0 0.0
        %378 = vmatpush1.xpose.msra.mxu0 0.0
        %379 = vmatprep.subr.mxu0 0.0
        %380 = vmatpush1.xpose.msra.mxu0 0.0
        %381 = vmatprep.subr.mxu0 0.0
        %382 = vmatpush1.xpose.msra.mxu0 0.0
        %383 = vmatprep.subr.mxu0 0.0
        %384 = vmatpush1.xpose.msra.mxu0 0.0
        %385 = vmatprep.subr.mxu0 0.0
        %386 = vmatpush1.xpose.msra.mxu0 0.0
        %387 = vmatprep.subr.mxu0 0.0
        %388 = vmatpush1.xpose.msra.mxu0 0.0
        %389 = vmatprep.subr.mxu0 0.0
        %390 = vmatpush1.xpose.msra.mxu0 0.0
        %391 = vmatprep.subr.mxu0 0.0
        %392 = vmatpush1.xpose.msra.mxu0 0.0
        %393 = vmatprep.subr.mxu0 0.0
        %394 = vmatpush1.xpose.msra.mxu0 0.0
        %395 = vmatprep.subr.mxu0 0.0
        %396 = vmatpush1.xpose.msra.mxu0 0.0
        %397 = vmatprep.subr.mxu0 0.0
        %398 = vmatpush1.xpose.msra.mxu0 0.0
        %399 = vmatprep.mubr.f32.mxu0 0.0
        %400 = vmatmul.mubr.f32.gmra.mrb[0].mxu0 %v330
        %v401 = vpop.f32.mrb[0].mxu0
        %v402 = vadd.f32 0.0, %v401
        %v403 = vpop.f32.mrb[0].mxu0
        %404 = vdwg.mxu0
        %v405 = vsel %vm328, %v402, -inf
        %406 = vmax.xlane.f32.xlu0 %v405
        %v407 = vpop.xlane.xlu0 %406
        %v408 = vsub.f32 %v402, %v407
        %v409 = vmul.f32 %v408, 1.442695
        %v410 = vpow.pop %v409
        %v411 = vsel %vm328, %v410, 0.0
        %412 = vadd.xlane.f32.xlu0 %v411
        %v413 = vpop.xlane.xlu0 %412
        %v414 = vrcp.pop %v413
        %v415 = vmul.f32 %v410, %v414
        %v417 = vsel %vm328, %v415, 0
        %419 = vmatprep.subr.mxu0 0.0
        %420 = vmatpush1.msra.mxu0 %v327
        %421 = vmatprep.subr.mxu0 0.0
        %422 = vmatpush1.msra.mxu0 0.0
        %423 = vmatprep.subr.mxu0 0.0
        %424 = vmatpush1.msra.mxu0 0.0
        %425 = vmatprep.subr.mxu0 0.0
        %426 = vmatpush1.msra.mxu0 0.0
        %427 = vmatprep.subr.mxu0 0.0
        %428 = vmatpush1.msra.mxu0 0.0
        %429 = vmatprep.subr.mxu0 0.0
        %430 = vmatpush1.msra.mxu0 0.0
        %431 = vmatprep.subr.mxu0 0.0
        %432 = vmatpush1.msra.mxu0 0.0
        %433 = vmatprep.subr.mxu0 0.0
        %434 = vmatpush1.msra.mxu0 0.0
        %435 = vmatprep.subr.mxu0 0.0
        %436 = vmatpush1.msra.mxu0 0.0
        %437 = vmatprep.subr.mxu0 0.0
        %438 = vmatpush1.msra.mxu0 0.0
        %439 = vmatprep.subr.mxu0 0.0
        %440 = vmatpush1.msra.mxu0 0.0
        %441 = vmatprep.subr.mxu0 0.0
        %442 = vmatpush1.msra.mxu0 0.0
        %443 = vmatprep.subr.mxu0 0.0
        %444 = vmatpush1.msra.mxu0 0.0
        %445 = vmatprep.subr.mxu0 0.0
        %446 = vmatpush1.msra.mxu0 0.0
        %447 = vmatprep.subr.mxu0 0.0
        %448 = vmatpush1.msra.mxu0 0.0
        %449 = vmatprep.subr.mxu0 0.0
        %450 = vmatpush1.msra.mxu0 0.0
        %451 = vmatprep.subr.mxu0 0.0
        %452 = vmatpush1.msra.mxu0 0.0
        %453 = vmatprep.subr.mxu0 0.0
        %454 = vmatpush1.msra.mxu0 0.0
        %455 = vmatprep.subr.mxu0 0.0
        %456 = vmatpush1.msra.mxu0 0.0
        %457 = vmatprep.subr.mxu0 0.0
        %458 = vmatpush1.msra.mxu0 0.0
        %459 = vmatprep.subr.mxu0 0.0
        %460 = vmatpush1.msra.mxu0 0.0
        %461 = vmatprep.subr.mxu0 0.0
        %462 = vmatpush1.msra.mxu0 0.0
        %463 = vmatprep.subr.mxu0 0.0
        %464 = vmatpush1.msra.mxu0 0.0
        %465 = vmatprep.subr.mxu0 0.0
        %466 = vmatpush1.msra.mxu0 0.0
        %467 = vmatprep.subr.mxu0 0.0
        %468 = vmatpush1.msra.mxu0 0.0
        %469 = vmatprep.subr.mxu0 0.0
        %470 = vmatpush1.msra.mxu0 0.0
        %471 = vmatprep.subr.mxu0 0.0
        %472 = vmatpush1.msra.mxu0 0.0
        %473 = vmatprep.subr.mxu0 0.0
        %474 = vmatpush1.msra.mxu0 0.0
        %475 = vmatprep.subr.mxu0 0.0
        %476 = vmatpush1.msra.mxu0 0.0
        %477 = vmatprep.subr.mxu0 0.0
        %478 = vmatpush1.msra.mxu0 0.0
        %479 = vmatprep.subr.mxu0 0.0
        %480 = vmatpush1.msra.mxu0 0.0
        %481 = vmatprep.subr.mxu0 0.0
        %482 = vmatpush1.msra.mxu0 0.0
        %483 = vmatprep.mubr.f32.mxu0 0.0
        %484 = vmatmul.mubr.f32.gmra.mrb[0].mxu0 %v417
        %v485 = vpop.f32.mrb[0].mxu0
        %v486 = vadd.f32 0.0, %v485
        %v487 = vpop.f32.mrb[0].mxu0
        %488 = vdwg.mxu0
        %489 = vrot.lane.b32.xlu0 %v325, 120
        %v490 = vpop.permute.xlu0 %489
        %491 = vrot.lane.b32.xlu0 %v326, 120
        %v492 = vpop.permute.xlu0 %491
        %v493 = vsel %vm328, %v490, 0
        %v495 = vsel %vm328, %v492, 0
        %497 = vmatprep.subr.mxu0 0.0
        %498 = vmatpush1.xpose.msra.mxu0 %v495
        %499 = vmatprep.subr.mxu0 0.0
        %500 = vmatpush1.xpose.msra.mxu0 0.0
        %501 = vmatprep.subr.mxu0 0.0
        %502 = vmatpush1.xpose.msra.mxu0 0.0
        %503 = vmatprep.subr.mxu0 0.0
        %504 = vmatpush1.xpose.msra.mxu0 0.0
        %505 = vmatprep.subr.mxu0 0.0
        %506 = vmatpush1.xpose.msra.mxu0 0.0
        %507 = vmatprep.subr.mxu0 0.0
        %508 = vmatpush1.xpose.msra.mxu0 0.0
        %509 = vmatprep.subr.mxu0 0.0
        %510 = vmatpush1.xpose.msra.mxu0 0.0
        %511 = vmatprep.subr.mxu0 0.0
        %512 = vmatpush1.xpose.msra.mxu0 0.0
        %513 = vmatprep.subr.mxu0 0.0
        %514 = vmatpush1.xpose.msra.mxu0 0.0
        %515 = vmatprep.subr.mxu0 0.0
        %516 = vmatpush1.xpose.msra.mxu0 0.0
        %517 = vmatprep.subr.mxu0 0.0
        %518 = vmatpush1.xpose.msra.mxu0 0.0
        %519 = vmatprep.subr.mxu0 0.0
        %520 = vmatpush1.xpose.msra.mxu0 0.0
        %521 = vmatprep.subr.mxu0 0.0
        %522 = vmatpush1.xpose.msra.mxu0 0.0
        %523 = vmatprep.subr.mxu0 0.0
        %524 = vmatpush1.xpose.msra.mxu0 0.0
        %525 = vmatprep.subr.mxu0 0.0
        %526 = vmatpush1.xpose.msra.mxu0 0.0
        %527 = vmatprep.subr.mxu0 0.0
        %528 = vmatpush1.xpose.msra.mxu0 0.0
        %529 = vmatprep.subr.mxu0 0.0
        %530 = vmatpush1.xpose.msra.mxu0 0.0
        %531 = vmatprep.subr.mxu0 0.0
        %532 = vmatpush1.xpose.msra.mxu0 0.0
        %533 = vmatprep.subr.mxu0 0.0
        %534 = vmatpush1.xpose.msra.mxu0 0.0
        %535 = vmatprep.subr.mxu0 0.0
        %536 = vmatpush1.xpose.msra.mxu0 0.0
        %537 = vmatprep.subr.mxu0 0.0
        %538 = vmatpush1.xpose.msra.mxu0 0.0
        %539 = vmatprep.subr.mxu0 0.0
        %540 = vmatpush1.xpose.msra.mxu0 0.0
        %541 = vmatprep.subr.mxu0 0.0
        %542 = vmatpush1.xpose.msra.mxu0 0.0
        %543 = vmatprep.subr.mxu0 0.0
        %544 = vmatpush1.xpose.msra.mxu0 0.0
        %545 = vmatprep.subr.mxu0 0.0
        %546 = vmatpush1.xpose.msra.mxu0 0.0
        %547 = vmatprep.subr.mxu0 0.0
        %548 = vmatpush1.xpose.msra.mxu0 0.0
        %549 = vmatprep.subr.mxu0 0.0
        %550 = vmatpush1.xpose.msra.mxu0 0.0
        %551 = vmatprep.subr.mxu0 0.0
        %552 = vmatpush1.xpose.msra.mxu0 0.0
        %553 = vmatprep.subr.mxu0 0.0
        %554 = vmatpush1.xpose.msra.mxu0 0.0
        %555 = vmatprep.subr.mxu0 0.0
        %556 = vmatpush1.xpose.msra.mxu0 0.0
        %557 = vmatprep.subr.mxu0 0.0
        %558 = vmatpush1.xpose.msra.mxu0 0.0
        %559 = vmatprep.subr.mxu0 0.0
        %560 = vmatpush1.xpose.msra.mxu0 0.0
        %561 = vmatprep.mubr.f32.mxu0 0.0
        %562 = vmatmul.mubr.f32.gmra.mrb[0].mxu0 %v493
        %v563 = vpop.f32.mrb[0].mxu0
        %v564 = vadd.f32 0.0, %v563
        %v565 = vpop.f32.mrb[0].mxu0
        %566 = vdwg.mxu0
        %v567 = vsel %vm328, %v564, -inf
        %568 = vmax.xlane.f32.xlu0 %v567
        %v569 = vpop.xlane.xlu0 %568
        %v570 = vsub.f32 %v564, %v569
        %v571 = vmul.f32 %v570, 1.442695
        %v572 = vpow.pop %v571
        %v573 = vsel %vm328, %v572, 0.0
        %574 = vadd.xlane.f32.xlu0 %v573
        %v575 = vpop.xlane.xlu0 %574
        %v576 = vrcp.pop %v575
        %v577 = vmul.f32 %v572, %v576
        %579 = vrot.lane.b32.xlu0 %v327, 120
        %v580 = vpop.permute.xlu0 %579
        %v583 = vsel %vm328, %v577, 0
        %585 = vmatprep.subr.mxu0 0.0
        %586 = vmatpush1.msra.mxu0 %v580
        %587 = vmatprep.subr.mxu0 0.0
        %588 = vmatpush1.msra.mxu0 0.0
        %589 = vmatprep.subr.mxu0 0.0
        %590 = vmatpush1.msra.mxu0 0.0
        %591 = vmatprep.subr.mxu0 0.0
        %592 = vmatpush1.msra.mxu0 0.0
        %593 = vmatprep.subr.mxu0 0.0
        %594 = vmatpush1.msra.mxu0 0.0
        %595 = vmatprep.subr.mxu0 0.0
        %596 = vmatpush1.msra.mxu0 0.0
        %597 = vmatprep.subr.mxu0 0.0
        %598 = vmatpush1.msra.mxu0 0.0
        %599 = vmatprep.subr.mxu0 0.0
        %600 = vmatpush1.msra.mxu0 0.0
        %601 = vmatprep.subr.mxu0 0.0
        %602 = vmatpush1.msra.mxu0 0.0
        %603 = vmatprep.subr.mxu0 0.0
        %604 = vmatpush1.msra.mxu0 0.0
        %605 = vmatprep.subr.mxu0 0.0
        %606 = vmatpush1.msra.mxu0 0.0
        %607 = vmatprep.subr.mxu0 0.0
        %608 = vmatpush1.msra.mxu0 0.0
        %609 = vmatprep.subr.mxu0 0.0
        %610 = vmatpush1.msra.mxu0 0.0
        %611 = vmatprep.subr.mxu0 0.0
        %612 = vmatpush1.msra.mxu0 0.0
        %613 = vmatprep.subr.mxu0 0.0
        %614 = vmatpush1.msra.mxu0 0.0
        %615 = vmatprep.subr.mxu0 0.0
        %616 = vmatpush1.msra.mxu0 0.0
        %617 = vmatprep.subr.mxu0 0.0
        %618 = vmatpush1.msra.mxu0 0.0
        %619 = vmatprep.subr.mxu0 0.0
        %620 = vmatpush1.msra.mxu0 0.0
        %621 = vmatprep.subr.mxu0 0.0
        %622 = vmatpush1.msra.mxu0 0.0
        %623 = vmatprep.subr.mxu0 0.0
        %624 = vmatpush1.msra.mxu0 0.0
        %625 = vmatprep.subr.mxu0 0.0
        %626 = vmatpush1.msra.mxu0 0.0
        %627 = vmatprep.subr.mxu0 0.0
        %628 = vmatpush1.msra.mxu0 0.0
        %629 = vmatprep.subr.mxu0 0.0
        %630 = vmatpush1.msra.mxu0 0.0
        %631 = vmatprep.subr.mxu0 0.0
        %632 = vmatpush1.msra.mxu0 0.0
        %633 = vmatprep.subr.mxu0 0.0
        %634 = vmatpush1.msra.mxu0 0.0
        %635 = vmatprep.subr.mxu0 0.0
        %636 = vmatpush1.msra.mxu0 0.0
        %637 = vmatprep.subr.mxu0 0.0
        %638 = vmatpush1.msra.mxu0 0.0
        %639 = vmatprep.subr.mxu0 0.0
        %640 = vmatpush1.msra.mxu0 0.0
        %641 = vmatprep.subr.mxu0 0.0
        %642 = vmatpush1.msra.mxu0 0.0
        %643 = vmatprep.subr.mxu0 0.0
        %644 = vmatpush1.msra.mxu0 0.0
        %645 = vmatprep.subr.mxu0 0.0
        %646 = vmatpush1.msra.mxu0 0.0
        %647 = vmatprep.subr.mxu0 0.0
        %648 = vmatpush1.msra.mxu0 0.0
        %649 = vmatprep.mubr.f32.mxu0 0.0
        %650 = vmatmul.mubr.f32.gmra.mrb[0].mxu0 %v583
        %v651 = vpop.f32.mrb[0].mxu0
        %v652 = vadd.f32 0.0, %v651
        %v653 = vpop.f32.mrb[0].mxu0
        %654 = vdwg.mxu0
        %v655 = vadd.f32 %v415, %v577
        %656 = vrot.lane.b32.xlu0 %v325, 112
        %v657 = vpop.permute.xlu0 %656
        %658 = vrot.lane.b32.xlu0 %v326, 112
        %v659 = vpop.permute.xlu0 %658
        %v660 = vsel %vm328, %v657, 0
        %v662 = vsel %vm328, %v659, 0
        %664 = vmatprep.subr.mxu0 0.0
        %665 = vmatpush1.xpose.msra.mxu0 %v662
        %666 = vmatprep.subr.mxu0 0.0
        %667 = vmatpush1.xpose.msra.mxu0 0.0
        %668 = vmatprep.subr.mxu0 0.0
        %669 = vmatpush1.xpose.msra.mxu0 0.0
        %670 = vmatprep.subr.mxu0 0.0
        %671 = vmatpush1.xpose.msra.mxu0 0.0
        %672 = vmatprep.subr.mxu0 0.0
        %673 = vmatpush1.xpose.msra.mxu0 0.0
        %674 = vmatprep.subr.mxu0 0.0
        %675 = vmatpush1.xpose.msra.mxu0 0.0
        %676 = vmatprep.subr.mxu0 0.0
        %677 = vmatpush1.xpose.msra.mxu0 0.0
        %678 = vmatprep.subr.mxu0 0.0
        %679 = vmatpush1.xpose.msra.mxu0 0.0
        %680 = vmatprep.subr.mxu0 0.0
        %681 = vmatpush1.xpose.msra.mxu0 0.0
        %682 = vmatprep.subr.mxu0 0.0
        %683 = vmatpush1.xpose.msra.mxu0 0.0
        %684 = vmatprep.subr.mxu0 0.0
        %685 = vmatpush1.xpose.msra.mxu0 0.0
        %686 = vmatprep.subr.mxu0 0.0
        %687 = vmatpush1.xpose.msra.mxu0 0.0
        %688 = vmatprep.subr.mxu0 0.0
        %689 = vmatpush1.xpose.msra.mxu0 0.0
        %690 = vmatprep.subr.mxu0 0.0
        %691 = vmatpush1.xpose.msra.mxu0 0.0
        %692 = vmatprep.subr.mxu0 0.0
        %693 = vmatpush1.xpose.msra.mxu0 0.0
        %694 = vmatprep.subr.mxu0 0.0
        %695 = vmatpush1.xpose.msra.mxu0 0.0
        %696 = vmatprep.subr.mxu0 0.0
        %697 = vmatpush1.xpose.msra.mxu0 0.0
        %698 = vmatprep.subr.mxu0 0.0
        %699 = vmatpush1.xpose.msra.mxu0 0.0
        %700 = vmatprep.subr.mxu0 0.0
        %701 = vmatpush1.xpose.msra.mxu0 0.0
        %702 = vmatprep.subr.mxu0 0.0
        %703 = vmatpush1.xpose.msra.mxu0 0.0
        %704 = vmatprep.subr.mxu0 0.0
        %705 = vmatpush1.xpose.msra.mxu0 0.0
        %706 = vmatprep.subr.mxu0 0.0
        %707 = vmatpush1.xpose.msra.mxu0 0.0
        %708 = vmatprep.subr.mxu0 0.0
        %709 = vmatpush1.xpose.msra.mxu0 0.0
        %710 = vmatprep.subr.mxu0 0.0
        %711 = vmatpush1.xpose.msra.mxu0 0.0
        %712 = vmatprep.subr.mxu0 0.0
        %713 = vmatpush1.xpose.msra.mxu0 0.0
        %714 = vmatprep.subr.mxu0 0.0
        %715 = vmatpush1.xpose.msra.mxu0 0.0
        %716 = vmatprep.subr.mxu0 0.0
        %717 = vmatpush1.xpose.msra.mxu0 0.0
        %718 = vmatprep.subr.mxu0 0.0
        %719 = vmatpush1.xpose.msra.mxu0 0.0
        %720 = vmatprep.subr.mxu0 0.0
        %721 = vmatpush1.xpose.msra.mxu0 0.0
        %722 = vmatprep.subr.mxu0 0.0
        %723 = vmatpush1.xpose.msra.mxu0 0.0
        %724 = vmatprep.subr.mxu0 0.0
        %725 = vmatpush1.xpose.msra.mxu0 0.0
        %726 = vmatprep.subr.mxu0 0.0
        %727 = vmatpush1.xpose.msra.mxu0 0.0
        %728 = vmatprep.mubr.f32.mxu0 0.0
        %729 = vmatmul.mubr.f32.gmra.mrb[0].mxu0 %v660
        %v730 = vpop.f32.mrb[0].mxu0
        %v731 = vadd.f32 0.0, %v730
        %v732 = vpop.f32.mrb[0].mxu0
        %733 = vdwg.mxu0
        %v734 = vsel %vm328, %v731, -inf
        %735 = vmax.xlane.f32.xlu0 %v734
        %v736 = vpop.xlane.xlu0 %735
        %v737 = vsub.f32 %v731, %v736
        %v738 = vmul.f32 %v737, 1.442695
        %v739 = vpow.pop %v738
        %v740 = vsel %vm328, %v739, 0.0
        %741 = vadd.xlane.f32.xlu0 %v740
        %v742 = vpop.xlane.xlu0 %741
        %v743 = vrcp.pop %v742
        %v744 = vmul.f32 %v739, %v743
        %745 = vrot.lane.b32.xlu0 %v327, 112
        %v746 = vpop.permute.xlu0 %745
        %v749 = vsel %vm328, %v744, 0
        %751 = vmatprep.subr.mxu0 0.0
        %752 = vmatpush1.msra.mxu0 %v746
        %753 = vmatprep.subr.mxu0 0.0
        %754 = vmatpush1.msra.mxu0 0.0
        %755 = vmatprep.subr.mxu0 0.0
        %756 = vmatpush1.msra.mxu0 0.0
        %757 = vmatprep.subr.mxu0 0.0
        %758 = vmatpush1.msra.mxu0 0.0
        %759 = vmatprep.subr.mxu0 0.0
        %760 = vmatpush1.msra.mxu0 0.0
        %761 = vmatprep.subr.mxu0 0.0
        %762 = vmatpush1.msra.mxu0 0.0
        %763 = vmatprep.subr.mxu0 0.0
        %764 = vmatpush1.msra.mxu0 0.0
        %765 = vmatprep.subr.mxu0 0.0
        %766 = vmatpush1.msra.mxu0 0.0
        %767 = vmatprep.subr.mxu0 0.0
        %768 = vmatpush1.msra.mxu0 0.0
        %769 = vmatprep.subr.mxu0 0.0
        %770 = vmatpush1.msra.mxu0 0.0
        %771 = vmatprep.subr.mxu0 0.0
        %772 = vmatpush1.msra.mxu0 0.0
        %773 = vmatprep.subr.mxu0 0.0
        %774 = vmatpush1.msra.mxu0 0.0
        %775 = vmatprep.subr.mxu0 0.0
        %776 = vmatpush1.msra.mxu0 0.0
        %777 = vmatprep.subr.mxu0 0.0
        %778 = vmatpush1.msra.mxu0 0.0
        %779 = vmatprep.subr.mxu0 0.0
        %780 = vmatpush1.msra.mxu0 0.0
        %781 = vmatprep.subr.mxu0 0.0
        %782 = vmatpush1.msra.mxu0 0.0
        %783 = vmatprep.subr.mxu0 0.0
        %784 = vmatpush1.msra.mxu0 0.0
        %785 = vmatprep.subr.mxu0 0.0
        %786 = vmatpush1.msra.mxu0 0.0
        %787 = vmatprep.subr.mxu0 0.0
        %788 = vmatpush1.msra.mxu0 0.0
        %789 = vmatprep.subr.mxu0 0.0
        %790 = vmatpush1.msra.mxu0 0.0
        %791 = vmatprep.subr.mxu0 0.0
        %792 = vmatpush1.msra.mxu0 0.0
        %793 = vmatprep.subr.mxu0 0.0
        %794 = vmatpush1.msra.mxu0 0.0
        %795 = vmatprep.subr.mxu0 0.0
        %796 = vmatpush1.msra.mxu0 0.0
        %797 = vmatprep.subr.mxu0 0.0
        %798 = vmatpush1.msra.mxu0 0.0
        %799 = vmatprep.subr.mxu0 0.0
        %800 = vmatpush1.msra.mxu0 0.0
        %801 = vmatprep.subr.mxu0 0.0
        %802 = vmatpush1.msra.mxu0 0.0
        %803 = vmatprep.subr.mxu0 0.0
        %804 = vmatpush1.msra.mxu0 0.0
        %805 = vmatprep.subr.mxu0 0.0
        %806 = vmatpush1.msra.mxu0 0.0
        %807 = vmatprep.subr.mxu0 0.0
        %808 = vmatpush1.msra.mxu0 0.0
        %809 = vmatprep.subr.mxu0 0.0
        %810 = vmatpush1.msra.mxu0 0.0
        %811 = vmatprep.subr.mxu0 0.0
        %812 = vmatpush1.msra.mxu0 0.0
        %813 = vmatprep.subr.mxu0 0.0
        %814 = vmatpush1.msra.mxu0 0.0
        %815 = vmatprep.mubr.f32.mxu0 0.0
        %816 = vmatmul.mubr.f32.gmra.mrb[0].mxu0 %v749
        %v817 = vpop.f32.mrb[0].mxu0
        %v818 = vadd.f32 0.0, %v817
        %v819 = vpop.f32.mrb[0].mxu0
        %820 = vdwg.mxu0
        %v821 = vadd.f32 %v655, %v744
        %822 = vrot.lane.b32.xlu0 %v325, 104
        %v823 = vpop.permute.xlu0 %822
        %824 = vrot.lane.b32.xlu0 %v326, 104
        %v825 = vpop.permute.xlu0 %824
        %v826 = vsel %vm328, %v823, 0
        %v828 = vsel %vm328, %v825, 0
        %830 = vmatprep.subr.mxu0 0.0
        %831 = vmatpush1.xpose.msra.mxu0 %v828
        %832 = vmatprep.subr.mxu0 0.0
        %833 = vmatpush1.xpose.msra.mxu0 0.0
        %834 = vmatprep.subr.mxu0 0.0
        %835 = vmatpush1.xpose.msra.mxu0 0.0
        %836 = vmatprep.subr.mxu0 0.0
        %837 = vmatpush1.xpose.msra.mxu0 0.0
        %838 = vmatprep.subr.mxu0 0.0
        %839 = vmatpush1.xpose.msra.mxu0 0.0
        %840 = vmatprep.subr.mxu0 0.0
        %841 = vmatpush1.xpose.msra.mxu0 0.0
        %842 = vmatprep.subr.mxu0 0.0
        %843 = vmatpush1.xpose.msra.mxu0 0.0
        %844 = vmatprep.subr.mxu0 0.0
        %845 = vmatpush1.xpose.msra.mxu0 0.0
        %846 = vmatprep.subr.mxu0 0.0
        %847 = vmatpush1.xpose.msra.mxu0 0.0
        %848 = vmatprep.subr.mxu0 0.0
        %849 = vmatpush1.xpose.msra.mxu0 0.0
        %850 = vmatprep.subr.mxu0 0.0
        %851 = vmatpush1.xpose.msra.mxu0 0.0
        %852 = vmatprep.subr.mxu0 0.0
        %853 = vmatpush1.xpose.msra.mxu0 0.0
        %854 = vmatprep.subr.mxu0 0.0
        %855 = vmatpush1.xpose.msra.mxu0 0.0
        %856 = vmatprep.subr.mxu0 0.0
        %857 = vmatpush1.xpose.msra.mxu0 0.0
        %858 = vmatprep.subr.mxu0 0.0
        %859 = vmatpush1.xpose.msra.mxu0 0.0
        %860 = vmatprep.subr.mxu0 0.0
        %861 = vmatpush1.xpose.msra.mxu0 0.0
        %862 = vmatprep.subr.mxu0 0.0
        %863 = vmatpush1.xpose.msra.mxu0 0.0
        %864 = vmatprep.subr.mxu0 0.0
        %865 = vmatpush1.xpose.msra.mxu0 0.0
        %866 = vmatprep.subr.mxu0 0.0
        %867 = vmatpush1.xpose.msra.mxu0 0.0
        %868 = vmatprep.subr.mxu0 0.0
        %869 = vmatpush1.xpose.msra.mxu0 0.0
        %870 = vmatprep.subr.mxu0 0.0
        %871 = vmatpush1.xpose.msra.mxu0 0.0
        %872 = vmatprep.subr.mxu0 0.0
        %873 = vmatpush1.xpose.msra.mxu0 0.0
        %874 = vmatprep.subr.mxu0 0.0
        %875 = vmatpush1.xpose.msra.mxu0 0.0
        %876 = vmatprep.subr.mxu0 0.0
        %877 = vmatpush1.xpose.msra.mxu0 0.0
        %878 = vmatprep.subr.mxu0 0.0
        %879 = vmatpush1.xpose.msra.mxu0 0.0
        %880 = vmatprep.subr.mxu0 0.0
        %881 = vmatpush1.xpose.msra.mxu0 0.0
        %882 = vmatprep.subr.mxu0 0.0
        %883 = vmatpush1.xpose.msra.mxu0 0.0
        %884 = vmatprep.subr.mxu0 0.0
        %885 = vmatpush1.xpose.msra.mxu0 0.0
        %886 = vmatprep.subr.mxu0 0.0
        %887 = vmatpush1.xpose.msra.mxu0 0.0
        %888 = vmatprep.subr.mxu0 0.0
        %889 = vmatpush1.xpose.msra.mxu0 0.0
        %890 = vmatprep.subr.mxu0 0.0
        %891 = vmatpush1.xpose.msra.mxu0 0.0
        %892 = vmatprep.subr.mxu0 0.0
        %893 = vmatpush1.xpose.msra.mxu0 0.0
        %894 = vmatprep.mubr.f32.mxu0 0.0
        %895 = vmatmul.mubr.f32.gmra.mrb[0].mxu0 %v826
        %v896 = vpop.f32.mrb[0].mxu0
        %v897 = vadd.f32 0.0, %v896
        %v898 = vpop.f32.mrb[0].mxu0
        %899 = vdwg.mxu0
        %v900 = vsel %vm328, %v897, -inf
        %901 = vmax.xlane.f32.xlu0 %v900
        %v902 = vpop.xlane.xlu0 %901
        %v903 = vsub.f32 %v897, %v902
        %v904 = vmul.f32 %v903, 1.442695
        %v905 = vpow.pop %v904
        %v906 = vsel %vm328, %v905, 0.0
        %907 = vadd.xlane.f32.xlu0 %v906
        %v908 = vpop.xlane.xlu0 %907
        %v909 = vrcp.pop %v908
        %v910 = vmul.f32 %v905, %v909
        %911 = vrot.lane.b32.xlu0 %v327, 104
        %v912 = vpop.permute.xlu0 %911
        %v915 = vsel %vm328, %v910, 0
        %917 = vmatprep.subr.mxu0 0.0
        %918 = vmatpush1.msra.mxu0 %v912
        %919 = vmatprep.subr.mxu0 0.0
        %920 = vmatpush1.msra.mxu0 0.0
        %921 = vmatprep.subr.mxu0 0.0
        %922 = vmatpush1.msra.mxu0 0.0
        %923 = vmatprep.subr.mxu0 0.0
        %924 = vmatpush1.msra.mxu0 0.0
        %925 = vmatprep.subr.mxu0 0.0
        %926 = vmatpush1.msra.mxu0 0.0
        %927 = vmatprep.subr.mxu0 0.0
        %928 = vmatpush1.msra.mxu0 0.0
        %929 = vmatprep.subr.mxu0 0.0
        %930 = vmatpush1.msra.mxu0 0.0
        %931 = vmatprep.subr.mxu0 0.0
        %932 = vmatpush1.msra.mxu0 0.0
        %933 = vmatprep.subr.mxu0 0.0
        %934 = vmatpush1.msra.mxu0 0.0
        %935 = vmatprep.subr.mxu0 0.0
        %936 = vmatpush1.msra.mxu0 0.0
        %937 = vmatprep.subr.mxu0 0.0
        %938 = vmatpush1.msra.mxu0 0.0
        %939 = vmatprep.subr.mxu0 0.0
        %940 = vmatpush1.msra.mxu0 0.0
        %941 = vmatprep.subr.mxu0 0.0
        %942 = vmatpush1.msra.mxu0 0.0
        %943 = vmatprep.subr.mxu0 0.0
        %944 = vmatpush1.msra.mxu0 0.0
        %945 = vmatprep.subr.mxu0 0.0
        %946 = vmatpush1.msra.mxu0 0.0
        %947 = vmatprep.subr.mxu0 0.0
        %948 = vmatpush1.msra.mxu0 0.0
        %949 = vmatprep.subr.mxu0 0.0
        %950 = vmatpush1.msra.mxu0 0.0
        %951 = vmatprep.subr.mxu0 0.0
        %952 = vmatpush1.msra.mxu0 0.0
        %953 = vmatprep.subr.mxu0 0.0
        %954 = vmatpush1.msra.mxu0 0.0
        %955 = vmatprep.subr.mxu0 0.0
        %956 = vmatpush1.msra.mxu0 0.0
        %957 = vmatprep.subr.mxu0 0.0
        %958 = vmatpush1.msra.mxu0 0.0
        %959 = vmatprep.subr.mxu0 0.0
        %960 = vmatpush1.msra.mxu0 0.0
        %961 = vmatprep.subr.mxu0 0.0
        %962 = vmatpush1.msra.mxu0 0.0
        %963 = vmatprep.subr.mxu0 0.0
        %964 = vmatpush1.msra.mxu0 0.0
        %965 = vmatprep.subr.mxu0 0.0
        %966 = vmatpush1.msra.mxu0 0.0
        %967 = vmatprep.subr.mxu0 0.0
        %968 = vmatpush1.msra.mxu0 0.0
        %969 = vmatprep.subr.mxu0 0.0
        %970 = vmatpush1.msra.mxu0 0.0
        %971 = vmatprep.subr.mxu0 0.0
        %972 = vmatpush1.msra.mxu0 0.0
        %973 = vmatprep.subr.mxu0 0.0
        %974 = vmatpush1.msra.mxu0 0.0
        %975 = vmatprep.subr.mxu0 0.0
        %976 = vmatpush1.msra.mxu0 0.0
        %977 = vmatprep.subr.mxu0 0.0
        %978 = vmatpush1.msra.mxu0 0.0
        %979 = vmatprep.subr.mxu0 0.0
        %980 = vmatpush1.msra.mxu0 0.0
        %981 = vmatprep.mubr.f32.mxu0 0.0
        %982 = vmatmul.mubr.f32.gmra.mrb[0].mxu0 %v915
        %v983 = vpop.f32.mrb[0].mxu0
        %v984 = vadd.f32 0.0, %v983
        %v985 = vpop.f32.mrb[0].mxu0
        %986 = vdwg.mxu0
        %v987 = vadd.f32 %v821, %v910
        %989 = vrot.lane.b32.xlu0 %v652, 8
        %v990 = vpop.permute.xlu0 %989
        %993 = vrot.lane.b32.xlu0 %v818, 16
        %v994 = vpop.permute.xlu0 %993
        %997 = vrot.lane.b32.xlu0 %v984, 24
        %v998 = vpop.permute.xlu0 %997
        %v1000 = vsel %vm328, %v486, %v990
        %vm1001 = vcmask 130048
        %v1002 = vsel %vm1001, %v1000, %v994
        %vm1003 = vcmask 195584
        %v1004 = vsel %vm1003, %v1002, %v998
        %v1005 = vld [vmem:[%s3] sm:$0xff]
        %v1006 = vld [vmem:[%s3 + $0x8] sm:$0xff]
        %v1007 = vld [vmem:[%s3 + $0x10] sm:$0xff]
        %v1008 = vld [vmem:[%s3 + $0x18] sm:$0xff]
        %v1009 = vld [vmem:[%s4] sm:$0x1]
        %v1011 = vlaneseq
        %v1012 = vshrl.u32 %v1011, 7
        %v1013 = vsub.s32 0, %v1012
        %v1014 = vrot.slane %v1009, %v1013
        %vm1016 = vcmask 261120
        %v1018 = vsel %vm1016, %v1004, 0
        %1020 = vmatprep.subr.mxu0 0.0
        %1021 = vmatpush1.msra.mxu0 %v1005
        %1022 = vmatprep.subr.mxu0 0.0
        %1023 = vmatpush1.msra.mxu0 %v1006
        %1024 = vmatprep.subr.mxu0 0.0
        %1025 = vmatpush1.msra.mxu0 %v1007
        %1026 = vmatprep.subr.mxu0 0.0
        %1027 = vmatpush1.msra.mxu0 %v1008
        %1028 = vmatprep.subr.mxu0 0.0
        %1029 = vmatpush1.msra.mxu0 0.0
        %1030 = vmatprep.subr.mxu0 0.0
        %1031 = vmatpush1.msra.mxu0 0.0
        %1032 = vmatprep.subr.mxu0 0.0
        %1033 = vmatpush1.msra.mxu0 0.0
        %1034 = vmatprep.subr.mxu0 0.0
        %1035 = vmatpush1.msra.mxu0 0.0
        %1036 = vmatprep.subr.mxu0 0.0
        %1037 = vmatpush1.msra.mxu0 0.0
        %1038 = vmatprep.subr.mxu0 0.0
        %1039 = vmatpush1.msra.mxu0 0.0
        %1040 = vmatprep.subr.mxu0 0.0
        %1041 = vmatpush1.msra.mxu0 0.0
        %1042 = vmatprep.subr.mxu0 0.0
        %1043 = vmatpush1.msra.mxu0 0.0
        %1044 = vmatprep.subr.mxu0 0.0
        %1045 = vmatpush1.msra.mxu0 0.0
        %1046 = vmatprep.subr.mxu0 0.0
        %1047 = vmatpush1.msra.mxu0 0.0
        %1048 = vmatprep.subr.mxu0 0.0
        %1049 = vmatpush1.msra.mxu0 0.0
        %1050 = vmatprep.subr.mxu0 0.0
        %1051 = vmatpush1.msra.mxu0 0.0
        %1052 = vmatprep.subr.mxu0 0.0
        %1053 = vmatpush1.msra.mxu0 0.0
        %1054 = vmatprep.subr.mxu0 0.0
        %1055 = vmatpush1.msra.mxu0 0.0
        %1056 = vmatprep.subr.mxu0 0.0
        %1057 = vmatpush1.msra.mxu0 0.0
        %1058 = vmatprep.subr.mxu0 0.0
        %1059 = vmatpush1.msra.mxu0 0.0
        %1060 = vmatprep.subr.mxu0 0.0
        %1061 = vmatpush1.msra.mxu0 0.0
        %1062 = vmatprep.subr.mxu0 0.0
        %1063 = vmatpush1.msra.mxu0 0.0
        %1064 = vmatprep.subr.mxu0 0.0
        %1065 = vmatpush1.msra.mxu0 0.0
        %1066 = vmatprep.subr.mxu0 0.0
        %1067 = vmatpush1.msra.mxu0 0.0
        %1068 = vmatprep.subr.mxu0 0.0
        %1069 = vmatpush1.msra.mxu0 0.0
        %1070 = vmatprep.subr.mxu0 0.0
        %1071 = vmatpush1.msra.mxu0 0.0
        %1072 = vmatprep.subr.mxu0 0.0
        %1073 = vmatpush1.msra.mxu0 0.0
        %1074 = vmatprep.subr.mxu0 0.0
        %1075 = vmatpush1.msra.mxu0 0.0
        %1076 = vmatprep.subr.mxu0 0.0
        %1077 = vmatpush1.msra.mxu0 0.0
        %1078 = vmatprep.subr.mxu0 0.0
        %1079 = vmatpush1.msra.mxu0 0.0
        %1080 = vmatprep.subr.mxu0 0.0
        %1081 = vmatpush1.msra.mxu0 0.0
        %1082 = vmatprep.subr.mxu0 0.0
        %1083 = vmatpush1.msra.mxu0 0.0
        %1084 = vmatprep.mubr.f32.mxu0 0.0
        %1085 = vmatmul.mubr.f32.gmra.mrb[0].mxu0 %v1018
        %v1086 = vpop.f32.mrb[0].mxu0
        %v1087 = vadd.f32 %v1014, %v1086
        %v1088 = vpop.f32.mrb[0].mxu0
        %1089 = vdwg.mxu0
        %1090 = vst.msk [vmem:[%s324] sm:$0xff] %vm1016, %v1087
        %v1091 = vmul.f32 %v987, 0.25
        %1092 = vst.msk [vmem:[%s302] sm:$0xff] %vm328, %v1091
        %p1093 = scmp.lt.s32.totalorder %s25, 1
        %s1094 = scalar_select %p1093, %s25, 1
        %p1095 = scmp.lt.s32.totalorder %s26, 0
        %s1096 = scalar_select %p1095, %s26, 0
        %s1097 = sadd.s32 %s1096, %s1094
        %s1098 = smul.addr %s1097, 8
        %s1099 = scalar_lea.vmem %s5, %s1098
        %s1100 = sand.u32 %s193, 1
        %s1101 = scalar_lea.sflag [#allocation3], %s1100
        %s1102 = sand.u32 %s193, 1
        %s1103 = smul.addr %s1102, 8
        %s1104 = scalar_lea.vmem [#allocation2], %s1103
        // Predicated region
        $region41: #{multihead_attention_fwd.3} parent=39 // pred_check
          %p1105 = pneg %p175
        $region42: #{multihead_attention_fwd.3} parent=39 // pred_check_branch
          %1107 = sbr.rel (%p1105) target = $region44
        $region43: #{multihead_attention_fwd.3} parent=39 // pred_region
          _
        $region44: #{multihead_attention_fwd.3} parent=39 // pred_fallthru
          _
        // Predicated region
        $region45: #{multihead_attention_fwd.3} parent=39 // pred_check
          %p1108 = pneg %p203
        $region46: #{multihead_attention_fwd.3} parent=39 // pred_check_branch
          %1110 = sbr.rel (%p1108) target = $region48
        $region47: #{multihead_attention_fwd.3} parent=39 // pred_region
          %s1112 = ssub.s32 128, 128
          %1113 = vsyncadd %s1101, %s1112
          %s1114 = sadd.s32 %s26, %s25
          %s1115 = smul.addr %s1114, 128
          %s1116 = scalar_lea.hbm %s6, %s1115
          %s1118 = sshll.u32 %s1104, 4
          %s1119 = int_to_ptr.vmem [resolvable:$true] %s1118
          %1121 = dma.vmem_to_hbm [thread:$0]  %s1119, 128, %s1116, %s1101
        $region48: #{multihead_attention_fwd.3} parent=39 // pred_fallthru
          _
      $region40: #{multihead_attention_fwd.3} parent=5 // pred_fallthru
        _
      %p1122 = scmp.le.s32.totalorder 2, %s16
      // Predicated region
      $region49: #{multihead_attention_fwd.3} parent=5 // pred_check
        %p1123 = pneg %p1122
      $region50: #{multihead_attention_fwd.3} parent=5 // pred_check_branch
        %1125 = sbr.rel (%p1123) target = $region52
      $region51: #{multihead_attention_fwd.3} parent=5 // pred_region
        %s1126 = ssub.s32 %s16, 2
        // Predicated region
        $region53: #{multihead_attention_fwd.3} parent=51 // pred_check
          %p1127 = pneg %p181
        $region54: #{multihead_attention_fwd.3} parent=51 // pred_check_branch
          %1129 = sbr.rel (%p1127) target = $region56
        $region55: #{multihead_attention_fwd.3} parent=51 // pred_region
          %p1130 = scmp.lt.s32.totalorder %s27, 1
          %s1131 = scalar_select %p1130, %s27, 1
          %p1132 = scmp.lt.s32.totalorder %s28, 0
          %s1133 = scalar_select %p1132, %s28, 0
          %s1134 = sadd.s32 %s1133, %s1131
          %s1135 = smul.addr %s1134, 8
          %s1136 = scalar_lea.vmem %s5, %s1135
        $region56: #{multihead_attention_fwd.3} parent=51 // pred_fallthru
          _
        // Predicated region
        $region57: #{multihead_attention_fwd.3} parent=51 // pred_check
          %p1137 = pneg %p209
        $region58: #{multihead_attention_fwd.3} parent=51 // pred_check_branch
          %1139 = sbr.rel (%p1137) target = $region60
        $region59: #{multihead_attention_fwd.3} parent=51 // pred_region
          %s1140 = sand.u32 %s194, 1
          %s1141 = scalar_lea.sflag [#allocation3], %s1140
          %s1142 = sand.u32 %s194, 1
          %s1143 = smul.addr %s1142, 8
          %s1144 = scalar_lea.vmem [#allocation2], %s1143
          %1145 = dma.done %s1141, 128
        $region60: #{multihead_attention_fwd.3} parent=51 // pred_fallthru
          _
      $region52: #{multihead_attention_fwd.3} parent=5 // pred_fallthru
        _
    $region6: #{multihead_attention_fwd.3} parent=1 // loop_footer
      %s20 = sadd.s32 1, %s16
    $region7: #{multihead_attention_fwd.3} parent=1 // loop_footer_branch
      %15 = sbr.rel target = $region3
    $region8: #{multihead_attention_fwd.3} parent=1 // loop_exit
      _
    %1146 = vsyncpa [#allocation3], 1
    %s1147 = scalar_lea.sflag [#allocation3], 1
    %1148 = vsyncpa %s1147, 1

</llo_original>
